<compile_context>
chip_gen: v7x
topology: tpu7x:2x2x1
jax: 0.10.0
libtpu: 0.0.40
codegen_flags: <defaults>
</compile_context>

<pallas_src>
import math
import functools

import jax
import jax.numpy as jnp
from jax.experimental import pallas as pl
from jax.experimental.pallas import tpu as pltpu

# --- config (small, consistent with a BERT layer) ---
BATCH = 2
SEQ = 8
HIDDEN = 32
NUM_HEADS = 4
HEAD_DIM = HIDDEN // NUM_HEADS
INTERMEDIATE = 64
LN_EPS = 1e-12

# MXU operand dtype (perf review: bf16 operands, f32 accumulation).
MATMUL_DTYPE = jnp.bfloat16


# ---------------------------------------------------------------------------
# Math helpers (usable both inside the kernel and in the reference)
# ---------------------------------------------------------------------------
def _recip(x):
    """Reciprocal: EUP approx seed + one Newton step -> ~f32 accuracy."""
    r = pl.reciprocal(x, approx=True)
    return r * (2.0 - x * r)


_ERF_P = 0.3275911
_ERF_A = (0.254829592, -0.284496736, 1.421413741, -1.453152027, 1.061405429)


def _erf_approx(z):
    """Abramowitz & Stegun 7.1.26 erf, |error| <= 1.5e-7 (exp/mul/add/select only)."""
    sgn = jnp.where(z >= 0.0, 1.0, -1.0)
    a = jnp.abs(z)
    t = _recip(1.0 + _ERF_P * a)
    a1, a2, a3, a4, a5 = _ERF_A
    poly = ((((a5 * t + a4) * t + a3) * t + a2) * t + a1) * t
    return sgn * (1.0 - poly * jnp.exp(-a * a))


def _gelu(x, erf):
    # exact GELU, as in pytorch_pretrained_bert: x * 0.5 * (1 + erf(x / sqrt(2)))
    return x * 0.5 * (1.0 + erf(x / math.sqrt(2.0)))


def _layer_norm(v, gamma, beta):
    u = v.mean(axis=-1, keepdims=True)
    s = ((v - u) ** 2).mean(axis=-1, keepdims=True)
    # rsqrt -> EUP slot instead of a VALU divide
    return (v - u) * jax.lax.rsqrt(s + LN_EPS) * gamma + beta


# ---------------------------------------------------------------------------
# Kernel: one grid step = one batch row's full (S, H) sequence
# ---------------------------------------------------------------------------
def bert_layer_kernel(
    x_ref, mask_ref, wqkv_ref, aow_ref, iw_ref, ow_ref, vec_ref, out_ref,
    *, hidden, num_heads, head_dim, intermediate,
):
    H, NH, DH, I = hidden, num_heads, head_dim, intermediate

    x = x_ref[...].astype(jnp.float32)          # (S, H)  this batch row's tokens
    mask = mask_ref[...].astype(jnp.float32)    # (1, S)  additive attention mask
    vecs = vec_ref[...].astype(jnp.float32)     # (8, W)  packed bias / LN vectors

    bqkv = vecs[0:1, :3 * H]                    # fused qkv bias (1, 3H)
    ib   = vecs[1:2, :I]
    aob  = vecs[2:3, :H]
    g1   = vecs[3:4, :H]
    b1   = vecs[4:5, :H]
    ob   = vecs[5:6, :H]
    g2   = vecs[6:7, :H]
    b2   = vecs[7:8, :H]

    # --- BertSelfAttention: fused QKV projection (bf16 operands, f32 acc) ---
    qkv = jnp.dot(x.astype(MATMUL_DTYPE), wqkv_ref[...],
                  preferred_element_type=jnp.float32) + bqkv           # (S, 3H) f32

    inv_sqrt_d = 1.0 / math.sqrt(DH)
    aow = aow_ref[...]                                                 # (H, H) bf16

    # Per-head attention folded straight into the attention-output projection:
    #   attn_acc += softmax(q_h k_h^T / sqrt(d) + mask) v_h @ aow[h*DH:(h+1)*DH]
    # -> no (S, H) context materialization, no lane-axis concat.
    # TODO(synk): at production sizes fold (batch*heads) into a grid axis / the
    # matmul M dimension so the score matmuls hit MXU-native 128/256-row tiles.
    attn_acc = jnp.zeros((x.shape[0], H), jnp.float32)
    for h in range(NH):                                                # short static loop
        qh = qkv[:,         h * DH:         (h + 1) * DH].astype(MATMUL_DTYPE)
        kh = qkv[:,     H + h * DH:     H + (h + 1) * DH].astype(MATMUL_DTYPE)
        vh = qkv[:, 2 * H + h * DH: 2 * H + (h + 1) * DH].astype(MATMUL_DTYPE)

        scores = jnp.einsum("qd,kd->qk", qh, kh,
                            preferred_element_type=jnp.float32) * inv_sqrt_d
        scores = scores + mask                                         # (S,S) + (1,S)
        scores = scores - scores.max(axis=-1, keepdims=True)
        p = jnp.exp(scores)
        p = p * _recip(p.sum(axis=-1, keepdims=True))                  # softmax
        # NOTE: attention-probs dropout is identity in eval mode.
        ctx_h = jnp.dot(p.astype(MATMUL_DTYPE), vh,
                        preferred_element_type=jnp.float32)            # (S, DH)
        attn_acc = attn_acc + jnp.dot(
            ctx_h.astype(MATMUL_DTYPE), aow[h * DH:(h + 1) * DH, :],   # sublane slice: free
            preferred_element_type=jnp.float32)

    # --- BertSelfOutput: dense + dropout(identity) + LayerNorm(residual) ---
    attn_out = _layer_norm(attn_acc + aob + x, g1, b1)

    # --- BertIntermediate: dense + exact-erf GELU ---
    inter = _gelu(jnp.dot(attn_out.astype(MATMUL_DTYPE), iw_ref[...],
                          preferred_element_type=jnp.float32) + ib,
                  erf=_erf_approx)                                     # (S, I)

    # --- BertOutput: dense + dropout(identity) + LayerNorm(residual) ---
    out_dense = jnp.dot(inter.astype(MATMUL_DTYPE), ow_ref[...],
                        preferred_element_type=jnp.float32) + ob
    out_ref[...] = _layer_norm(out_dense + attn_out, g2, b2).astype(out_ref.dtype)


# ---------------------------------------------------------------------------
# Wrapper
# ---------------------------------------------------------------------------
def pack_params(params, matmul_dtype=MATMUL_DTYPE):
    """Fuse QKV weights/biases, cast matmul weights to bf16, pack small vectors."""
    (qw, qb, kw, kb, vw, vb, aow, aob, g1, b1, iw, ib, ow, ob, g2, b2) = params
    wqkv = jnp.concatenate([qw, kw, vw], axis=1).astype(matmul_dtype)  # (H, 3H) bf16
    bqkv = jnp.concatenate([qb, kb, vb], axis=1)                       # (1, 3H) f32
    width = max(bqkv.shape[1], ib.shape[1])

    def row(v):
        return jnp.pad(v, ((0, 0), (0, width - v.shape[1])))

    vecs = jnp.concatenate(
        [row(bqkv), row(ib), row(aob), row(g1), row(b1), row(ob), row(g2), row(b2)],
        axis=0)                                                        # (8, width) f32
    return (wqkv, aow.astype(matmul_dtype), iw.astype(matmul_dtype),
            ow.astype(matmul_dtype), vecs)


def bert_layer(x, mask, params):
    """x: (B, S, H) f32; mask: (B, 1, S) additive f32; params: 16-array list."""
    B, S, H = x.shape
    NH = NUM_HEADS
    DH = H // NH
    wqkv, aow, iw, ow, vecs = pack_params(params)
    I = iw.shape[1]
    W = vecs.shape[1]

    x2d = x.reshape(B * S, H)            # row block b == batch b's sequence
    mask3d = mask.reshape(B, 1, S)

    kernel = functools.partial(
        bert_layer_kernel, hidden=H, num_heads=NH, head_dim=DH, intermediate=I)

    out2d = pl.pallas_call(
        kernel,
        out_shape=jax.ShapeDtypeStruct((B * S, H), x.dtype),
        grid=(B,),
        in_specs=[
            pl.BlockSpec((S, H), lambda b: (b, 0)),            # activation rows of batch b
            pl.BlockSpec((None, 1, S), lambda b: (b, 0, 0)),   # (1, S) additive mask
            pl.BlockSpec((H, 3 * H), lambda b: (0, 0)),        # fused QKV weight (resident)
            pl.BlockSpec((H, H), lambda b: (0, 0)),            # attn-output weight (resident)
            pl.BlockSpec((H, I), lambda b: (0, 0)),            # intermediate weight (resident)
            pl.BlockSpec((I, H), lambda b: (0, 0)),            # output weight (resident)
            pl.BlockSpec((8, W), lambda b: (0, 0)),            # packed bias / LN vectors
        ],
        out_specs=pl.BlockSpec((S, H), lambda b: (b, 0)),
        compiler_params=pltpu.CompilerParams(
            dimension_semantics=("parallel",),      # batch rows independent -> megacore split
            vmem_limit_bytes=32 * 1024 * 1024,      # explicit scoped-VMEM budget
        ),
    )(x2d, mask3d, wqkv, aow, iw, ow, vecs)
    return out2d.reshape(B, S, H)


# ---------------------------------------------------------------------------
# Pure-JAX reference
# ---------------------------------------------------------------------------
def ref_bert_layer(x, mask, params, matmul_dtype=jnp.float32):
    """Reference; matmul_dtype lets us match the kernel's bf16 MXU operands."""
    (qw, qb, kw, kb, vw, vb, aow, aob, g1, b1, iw, ib, ow, ob, g2, b2) = params

    def mm(a, b):
        return jnp.dot(a.astype(matmul_dtype), b.astype(matmul_dtype),
                       preferred_element_type=jnp.float32)

    def emm(eq, a, b):
        return jnp.einsum(eq, a.astype(matmul_dtype), b.astype(matmul_dtype),
                          preferred_element_type=jnp.float32)

    B, S, H = x.shape
    q = mm(x, qw) + qb
    k = mm(x, kw) + kb
    v = mm(x, vw) + vb
    qh = q.reshape(B, S, NUM_HEADS, HEAD_DIM).transpose(0, 2, 1, 3)
    kh = k.reshape(B, S, NUM_HEADS, HEAD_DIM).transpose(0, 2, 1, 3)
    vh = v.reshape(B, S, NUM_HEADS, HEAD_DIM).transpose(0, 2, 1, 3)
    scores = emm("bhqd,bhkd->bhqk", qh, kh) / math.sqrt(HEAD_DIM)
    scores = scores + mask[:, None, :, :]                       # (B,1,1,S) broadcast
    p = jax.nn.softmax(scores, axis=-1)
    ctx = emm("bhqk,bhkd->bhqd", p, vh).transpose(0, 2, 1, 3).reshape(B, S, H)
    attn_out = _layer_norm(mm(ctx, aow) + aob + x, g1, b1)
    inter = _gelu(mm(attn_out, iw) + ib, erf=jax.lax.erf)
    return _layer_norm(mm(inter, ow) + ob + attn_out, g2, b2)


def make_params(key):
    ks = jax.random.split(key, 16)
    std = 0.02

    def w(k, shape):
        return jax.random.normal(k, shape, jnp.float32) * std

    qw = w(ks[0], (HIDDEN, HIDDEN)); qb = w(ks[1], (1, HIDDEN))
    kw = w(ks[2], (HIDDEN, HIDDEN)); kb = w(ks[3], (1, HIDDEN))
    vw = w(ks[4], (HIDDEN, HIDDEN)); vb = w(ks[5], (1, HIDDEN))
    aow = w(ks[6], (HIDDEN, HIDDEN)); aob = w(ks[7], (1, HIDDEN))
    g1 = 1.0 + w(ks[8], (1, HIDDEN)); b1 = w(ks[9], (1, HIDDEN))
    iw = w(ks[10], (HIDDEN, INTERMEDIATE)); ib = w(ks[11], (1, INTERMEDIATE))
    ow = w(ks[12], (INTERMEDIATE, HIDDEN)); ob = w(ks[13], (1, HIDDEN))
    g2 = 1.0 + w(ks[14], (1, HIDDEN)); b2 = w(ks[15], (1, HIDDEN))
    return [qw, qb, kw, kb, vw, vb, aow, aob, g1, b1, iw, ib, ow, ob, g2, b2]


if __name__ == "__main__":
    key = jax.random.PRNGKey(0)
    k_x, k_p = jax.random.split(key)

    x = jax.random.normal(k_x, (BATCH, SEQ, HIDDEN), jnp.float32)

    # Additive extended attention mask: keep all tokens in batch 0,
    # mask the last 2 positions of batch 1 (HF 0 / -10000 convention).
    keep = jnp.ones((BATCH, SEQ), jnp.float32)
    keep = keep.at[1, -2:].set(0.0)
    mask = ((1.0 - keep) * -10000.0)[:, None, :]                 # (B, 1, S)

    params = make_params(k_p)

    out = jax.block_until_ready(bert_layer(x, mask, params))
    assert out.shape == (BATCH, SEQ, HIDDEN)

    # Tight check vs. a reference using the same bf16 MXU-operand precision
    # (f32 accumulation), per the review's correctness note.
    ref_mm = ref_bert_layer(x, mask, params, matmul_dtype=MATMUL_DTYPE)
    err_mm = float(jnp.max(jnp.abs(out - ref_mm)))
    assert jnp.allclose(out, ref_mm, rtol=1e-4, atol=1e-4), err_mm

    # Loose semantic check vs. the pure-f32 reference (difference is bf16
    # operand rounding only).
    ref_f32 = ref_bert_layer(x, mask, params, matmul_dtype=jnp.float32)
    err_f32 = float(jnp.max(jnp.abs(out - ref_f32)))
    assert jnp.allclose(out, ref_f32, rtol=0.0, atol=5e-2), err_f32

    print("KERNEL_OK")
</pallas_src>

<mosaic_0001>
module attributes {stable_mosaic.version = 11 : i64} {
  func.func @bert_layer_kernel(%arg0: i32, %arg1: memref<8x32xf32, #tpu.memory_space<vmem>>, %arg2: memref<1x1x8xf32, #tpu.memory_space<vmem>>, %arg3: memref<32x96xbf16, #tpu.memory_space<vmem>>, %arg4: memref<32x32xbf16, #tpu.memory_space<vmem>>, %arg5: memref<32x64xbf16, #tpu.memory_space<vmem>>, %arg6: memref<64x32xbf16, #tpu.memory_space<vmem>>, %arg7: memref<8x96xf32, #tpu.memory_space<vmem>>, %arg8: memref<8x32xf32, #tpu.memory_space<vmem>>) attributes {dimension_semantics = [#tpu.dimension_semantics<parallel>], iteration_bounds = array<i64: 2>, scalar_prefetch = 0 : i64, scratch_operands = 0 : i64, tpu.core_type = #tpu.core_type<tc>, window_params = [{transform_indices = @transform_0, window_bounds = array<i64: 8, 32>}, {transform_indices = @transform_1, window_bounds = array<i64: 1, 1, 8>}, {pipeline_mode = #tpu.pipeline_mode<synchronous>, transform_indices = @transform_2, window_bounds = array<i64: 32, 96>}, {pipeline_mode = #tpu.pipeline_mode<synchronous>, transform_indices = @transform_3, window_bounds = array<i64: 32, 32>}, {pipeline_mode = #tpu.pipeline_mode<synchronous>, transform_indices = @transform_4, window_bounds = array<i64: 32, 64>}, {pipeline_mode = #tpu.pipeline_mode<synchronous>, transform_indices = @transform_5, window_bounds = array<i64: 64, 32>}, {pipeline_mode = #tpu.pipeline_mode<synchronous>, transform_indices = @transform_6, window_bounds = array<i64: 8, 96>}, {transform_indices = @transform_7, window_bounds = array<i64: 8, 32>}]} {
    %c0 = arith.constant 0 : index
    %c0_0 = arith.constant 0 : index
    %0 = vector.load %arg1[%c0, %c0_0] : memref<8x32xf32, #tpu.memory_space<vmem>>, vector<8x32xf32>
    %c0_1 = arith.constant 0 : index
    %c0_2 = arith.constant 0 : index
    %c0_3 = arith.constant 0 : index
    %1 = vector.load %arg2[%c0_1, %c0_2, %c0_3] : memref<1x1x8xf32, #tpu.memory_space<vmem>>, vector<1x1x8xf32>
    %2 = vector.shape_cast %1 : vector<1x1x8xf32> to vector<1x8xf32>
    %c0_4 = arith.constant 0 : index
    %c0_5 = arith.constant 0 : index
    %3 = vector.load %arg7[%c0_4, %c0_5] : memref<8x96xf32, #tpu.memory_space<vmem>>, vector<8x96xf32>
    %4 = vector.extract_strided_slice %3 {offsets = [0, 0], sizes = [1, 96], strides = [1, 1]} : vector<8x96xf32> to vector<1x96xf32>
    %5 = vector.extract_strided_slice %3 {offsets = [1, 0], sizes = [1, 64], strides = [1, 1]} : vector<8x96xf32> to vector<1x64xf32>
    %6 = vector.extract_strided_slice %3 {offsets = [2, 0], sizes = [1, 32], strides = [1, 1]} : vector<8x96xf32> to vector<1x32xf32>
    %7 = vector.extract_strided_slice %3 {offsets = [3, 0], sizes = [1, 32], strides = [1, 1]} : vector<8x96xf32> to vector<1x32xf32>
    %8 = vector.extract_strided_slice %3 {offsets = [4, 0], sizes = [1, 32], strides = [1, 1]} : vector<8x96xf32> to vector<1x32xf32>
    %9 = vector.extract_strided_slice %3 {offsets = [5, 0], sizes = [1, 32], strides = [1, 1]} : vector<8x96xf32> to vector<1x32xf32>
    %10 = vector.extract_strided_slice %3 {offsets = [6, 0], sizes = [1, 32], strides = [1, 1]} : vector<8x96xf32> to vector<1x32xf32>
    %11 = vector.extract_strided_slice %3 {offsets = [7, 0], sizes = [1, 32], strides = [1, 1]} : vector<8x96xf32> to vector<1x32xf32>
    %12 = arith.truncf %0 : vector<8x32xf32> to vector<8x32xbf16>
    %c0_6 = arith.constant 0 : index
    %c0_7 = arith.constant 0 : index
    %13 = vector.load %arg3[%c0_6, %c0_7] : memref<32x96xbf16, #tpu.memory_space<vmem>>, vector<32x96xbf16>
    %cst = arith.constant dense<0.000000e+00> : vector<8x96xf32>
    %14 = tpu.matmul %12, %13, %cst {dimension_numbers = #tpu.dot_dimension_numbers<[1], [0], [0], [1], [0, 0, 1, 1], [], []>} : vector<8x32xbf16>, vector<32x96xbf16>, vector<8x96xf32> -> vector<8x96xf32>
    %15 = vector.broadcast %4 : vector<1x96xf32> to vector<8x96xf32>
    %16 = arith.addf %14, %15 : vector<8x96xf32>
    %c0_8 = arith.constant 0 : index
    %c0_9 = arith.constant 0 : index
    %17 = vector.load %arg4[%c0_8, %c0_9] : memref<32x32xbf16, #tpu.memory_space<vmem>>, vector<32x32xbf16>
    %cst_10 = arith.constant 0.000000e+00 : f32
    %18 = vector.broadcast %cst_10 : f32 to vector<8x32xf32>
    %19 = vector.extract_strided_slice %16 {offsets = [0, 0], sizes = [8, 8], strides = [1, 1]} : vector<8x96xf32> to vector<8x8xf32>
    %20 = arith.truncf %19 : vector<8x8xf32> to vector<8x8xbf16>
    %21 = vector.extract_strided_slice %16 {offsets = [0, 32], sizes = [8, 8], strides = [1, 1]} : vector<8x96xf32> to vector<8x8xf32>
    %22 = arith.truncf %21 : vector<8x8xf32> to vector<8x8xbf16>
    %23 = vector.extract_strided_slice %16 {offsets = [0, 64], sizes = [8, 8], strides = [1, 1]} : vector<8x96xf32> to vector<8x8xf32>
    %24 = arith.truncf %23 : vector<8x8xf32> to vector<8x8xbf16>
    "tpu.trace_start"() <{level = 10 : i32, message = "qd,kd->qk"}> : () -> ()
    %cst_11 = arith.constant dense<0.000000e+00> : vector<8x8xf32>
    %25 = tpu.matmul %20, %22, %cst_11 {dimension_numbers = #tpu.dot_dimension_numbers<[1], [1], [0], [0], [0, 0, 1, 0], [], []>} : vector<8x8xbf16>, vector<8x8xbf16>, vector<8x8xf32> -> vector<8x8xf32>
    "tpu.trace_stop"() : () -> ()
    %cst_12 = arith.constant 0.353553385 : f32
    %26 = vector.broadcast %cst_12 : f32 to vector<8x8xf32>
    %27 = arith.mulf %25, %26 : vector<8x8xf32>
    %28 = vector.broadcast %2 : vector<1x8xf32> to vector<8x8xf32>
    %29 = arith.addf %27, %28 : vector<8x8xf32>
    %cst_13 = arith.constant dense<0xFF800000> : vector<8xf32>
    %30 = vector.multi_reduction <maximumf>, %29, %cst_13 [1] : vector<8x8xf32> to vector<8xf32>
    %31 = vector.shape_cast %30 : vector<8xf32> to vector<8x1xf32>
    %32 = vector.broadcast %31 : vector<8x1xf32> to vector<8x8xf32>
    %33 = arith.subf %29, %32 : vector<8x8xf32>
    %34 = math.exp %33 : vector<8x8xf32>
    %cst_14 = arith.constant dense<0.000000e+00> : vector<8xf32>
    %35 = vector.multi_reduction <add>, %34, %cst_14 [1] : vector<8x8xf32> to vector<8xf32>
    %36 = vector.shape_cast %35 : vector<8xf32> to vector<8x1xf32>
    %37 = tpu.reciprocal %36 {approx = true} : vector<8x1xf32> -> vector<8x1xf32>
    %38 = arith.mulf %36, %37 : vector<8x1xf32>
    %cst_15 = arith.constant 2.000000e+00 : f32
    %39 = vector.broadcast %cst_15 : f32 to vector<8x1xf32>
    %40 = arith.subf %39, %38 : vector<8x1xf32>
    %41 = arith.mulf %37, %40 : vector<8x1xf32>
    %42 = vector.broadcast %41 : vector<8x1xf32> to vector<8x8xf32>
    %43 = arith.mulf %34, %42 : vector<8x8xf32>
    %44 = arith.truncf %43 : vector<8x8xf32> to vector<8x8xbf16>
    %cst_16 = arith.constant dense<0.000000e+00> : vector<8x8xf32>
    %45 = tpu.matmul %44, %24, %cst_16 {dimension_numbers = #tpu.dot_dimension_numbers<[1], [0], [0], [1], [0, 0, 1, 1], [], []>} : vector<8x8xbf16>, vector<8x8xbf16>, vector<8x8xf32> -> vector<8x8xf32>
    %46 = arith.truncf %45 : vector<8x8xf32> to vector<8x8xbf16>
    %47 = vector.extract_strided_slice %17 {offsets = [0, 0], sizes = [8, 32], strides = [1, 1]} : vector<32x32xbf16> to vector<8x32xbf16>
    %cst_17 = arith.constant dense<0.000000e+00> : vector<8x32xf32>
    %48 = tpu.matmul %46, %47, %cst_17 {dimension_numbers = #tpu.dot_dimension_numbers<[1], [0], [0], [1], [0, 0, 1, 1], [], []>} : vector<8x8xbf16>, vector<8x32xbf16>, vector<8x32xf32> -> vector<8x32xf32>
    %49 = arith.addf %18, %48 : vector<8x32xf32>
    %50 = vector.extract_strided_slice %16 {offsets = [0, 8], sizes = [8, 8], strides = [1, 1]} : vector<8x96xf32> to vector<8x8xf32>
    %51 = arith.truncf %50 : vector<8x8xf32> to vector<8x8xbf16>
    %52 = vector.extract_strided_slice %16 {offsets = [0, 40], sizes = [8, 8], strides = [1, 1]} : vector<8x96xf32> to vector<8x8xf32>
    %53 = arith.truncf %52 : vector<8x8xf32> to vector<8x8xbf16>
    %54 = vector.extract_strided_slice %16 {offsets = [0, 72], sizes = [8, 8], strides = [1, 1]} : vector<8x96xf32> to vector<8x8xf32>
    %55 = arith.truncf %54 : vector<8x8xf32> to vector<8x8xbf16>
    "tpu.trace_start"() <{level = 10 : i32, message = "qd,kd->qk"}> : () -> ()
    %cst_18 = arith.constant dense<0.000000e+00> : vector<8x8xf32>
    %56 = tpu.matmul %51, %53, %cst_18 {dimension_numbers = #tpu.dot_dimension_numbers<[1], [1], [0], [0], [0, 0, 1, 0], [], []>} : vector<8x8xbf16>, vector<8x8xbf16>, vector<8x8xf32> -> vector<8x8xf32>
    "tpu.trace_stop"() : () -> ()
    %cst_19 = arith.constant 0.353553385 : f32
    %57 = vector.broadcast %cst_19 : f32 to vector<8x8xf32>
    %58 = arith.mulf %56, %57 : vector<8x8xf32>
    %59 = vector.broadcast %2 : vector<1x8xf32> to vector<8x8xf32>
    %60 = arith.addf %58, %59 : vector<8x8xf32>
    %cst_20 = arith.constant dense<0xFF800000> : vector<8xf32>
    %61 = vector.multi_reduction <maximumf>, %60, %cst_20 [1] : vector<8x8xf32> to vector<8xf32>
    %62 = vector.shape_cast %61 : vector<8xf32> to vector<8x1xf32>
    %63 = vector.broadcast %62 : vector<8x1xf32> to vector<8x8xf32>
    %64 = arith.subf %60, %63 : vector<8x8xf32>
    %65 = math.exp %64 : vector<8x8xf32>
    %cst_21 = arith.constant dense<0.000000e+00> : vector<8xf32>
    %66 = vector.multi_reduction <add>, %65, %cst_21 [1] : vector<8x8xf32> to vector<8xf32>
    %67 = vector.shape_cast %66 : vector<8xf32> to vector<8x1xf32>
    %68 = tpu.reciprocal %67 {approx = true} : vector<8x1xf32> -> vector<8x1xf32>
    %69 = arith.mulf %67, %68 : vector<8x1xf32>
    %cst_22 = arith.constant 2.000000e+00 : f32
    %70 = vector.broadcast %cst_22 : f32 to vector<8x1xf32>
    %71 = arith.subf %70, %69 : vector<8x1xf32>
    %72 = arith.mulf %68, %71 : vector<8x1xf32>
    %73 = vector.broadcast %72 : vector<8x1xf32> to vector<8x8xf32>
    %74 = arith.mulf %65, %73 : vector<8x8xf32>
    %75 = arith.truncf %74 : vector<8x8xf32> to vector<8x8xbf16>
    %cst_23 = arith.constant dense<0.000000e+00> : vector<8x8xf32>
    %76 = tpu.matmul %75, %55, %cst_23 {dimension_numbers = #tpu.dot_dimension_numbers<[1], [0], [0], [1], [0, 0, 1, 1], [], []>} : vector<8x8xbf16>, vector<8x8xbf16>, vector<8x8xf32> -> vector<8x8xf32>
    %77 = arith.truncf %76 : vector<8x8xf32> to vector<8x8xbf16>
    %78 = vector.extract_strided_slice %17 {offsets = [8, 0], sizes = [8, 32], strides = [1, 1]} : vector<32x32xbf16> to vector<8x32xbf16>
    %cst_24 = arith.constant dense<0.000000e+00> : vector<8x32xf32>
    %79 = tpu.matmul %77, %78, %cst_24 {dimension_numbers = #tpu.dot_dimension_numbers<[1], [0], [0], [1], [0, 0, 1, 1], [], []>} : vector<8x8xbf16>, vector<8x32xbf16>, vector<8x32xf32> -> vector<8x32xf32>
    %80 = arith.addf %49, %79 : vector<8x32xf32>
    %81 = vector.extract_strided_slice %16 {offsets = [0, 16], sizes = [8, 8], strides = [1, 1]} : vector<8x96xf32> to vector<8x8xf32>
    %82 = arith.truncf %81 : vector<8x8xf32> to vector<8x8xbf16>
    %83 = vector.extract_strided_slice %16 {offsets = [0, 48], sizes = [8, 8], strides = [1, 1]} : vector<8x96xf32> to vector<8x8xf32>
    %84 = arith.truncf %83 : vector<8x8xf32> to vector<8x8xbf16>
    %85 = vector.extract_strided_slice %16 {offsets = [0, 80], sizes = [8, 8], strides = [1, 1]} : vector<8x96xf32> to vector<8x8xf32>
    %86 = arith.truncf %85 : vector<8x8xf32> to vector<8x8xbf16>
    "tpu.trace_start"() <{level = 10 : i32, message = "qd,kd->qk"}> : () -> ()
    %cst_25 = arith.constant dense<0.000000e+00> : vector<8x8xf32>
    %87 = tpu.matmul %82, %84, %cst_25 {dimension_numbers = #tpu.dot_dimension_numbers<[1], [1], [0], [0], [0, 0, 1, 0], [], []>} : vector<8x8xbf16>, vector<8x8xbf16>, vector<8x8xf32> -> vector<8x8xf32>
    "tpu.trace_stop"() : () -> ()
    %cst_26 = arith.constant 0.353553385 : f32
    %88 = vector.broadcast %cst_26 : f32 to vector<8x8xf32>
    %89 = arith.mulf %87, %88 : vector<8x8xf32>
    %90 = vector.broadcast %2 : vector<1x8xf32> to vector<8x8xf32>
    %91 = arith.addf %89, %90 : vector<8x8xf32>
    %cst_27 = arith.constant dense<0xFF800000> : vector<8xf32>
    %92 = vector.multi_reduction <maximumf>, %91, %cst_27 [1] : vector<8x8xf32> to vector<8xf32>
    %93 = vector.shape_cast %92 : vector<8xf32> to vector<8x1xf32>
    %94 = vector.broadcast %93 : vector<8x1xf32> to vector<8x8xf32>
    %95 = arith.subf %91, %94 : vector<8x8xf32>
    %96 = math.exp %95 : vector<8x8xf32>
    %cst_28 = arith.constant dense<0.000000e+00> : vector<8xf32>
    %97 = vector.multi_reduction <add>, %96, %cst_28 [1] : vector<8x8xf32> to vector<8xf32>
    %98 = vector.shape_cast %97 : vector<8xf32> to vector<8x1xf32>
    %99 = tpu.reciprocal %98 {approx = true} : vector<8x1xf32> -> vector<8x1xf32>
    %100 = arith.mulf %98, %99 : vector<8x1xf32>
    %cst_29 = arith.constant 2.000000e+00 : f32
    %101 = vector.broadcast %cst_29 : f32 to vector<8x1xf32>
    %102 = arith.subf %101, %100 : vector<8x1xf32>
    %103 = arith.mulf %99, %102 : vector<8x1xf32>
    %104 = vector.broadcast %103 : vector<8x1xf32> to vector<8x8xf32>
    %105 = arith.mulf %96, %104 : vector<8x8xf32>
    %106 = arith.truncf %105 : vector<8x8xf32> to vector<8x8xbf16>
    %cst_30 = arith.constant dense<0.000000e+00> : vector<8x8xf32>
    %107 = tpu.matmul %106, %86, %cst_30 {dimension_numbers = #tpu.dot_dimension_numbers<[1], [0], [0], [1], [0, 0, 1, 1], [], []>} : vector<8x8xbf16>, vector<8x8xbf16>, vector<8x8xf32> -> vector<8x8xf32>
    %108 = arith.truncf %107 : vector<8x8xf32> to vector<8x8xbf16>
    %109 = vector.extract_strided_slice %17 {offsets = [16, 0], sizes = [8, 32], strides = [1, 1]} : vector<32x32xbf16> to vector<8x32xbf16>
    %cst_31 = arith.constant dense<0.000000e+00> : vector<8x32xf32>
    %110 = tpu.matmul %108, %109, %cst_31 {dimension_numbers = #tpu.dot_dimension_numbers<[1], [0], [0], [1], [0, 0, 1, 1], [], []>} : vector<8x8xbf16>, vector<8x32xbf16>, vector<8x32xf32> -> vector<8x32xf32>
    %111 = arith.addf %80, %110 : vector<8x32xf32>
    %112 = vector.extract_strided_slice %16 {offsets = [0, 24], sizes = [8, 8], strides = [1, 1]} : vector<8x96xf32> to vector<8x8xf32>
    %113 = arith.truncf %112 : vector<8x8xf32> to vector<8x8xbf16>
    %114 = vector.extract_strided_slice %16 {offsets = [0, 56], sizes = [8, 8], strides = [1, 1]} : vector<8x96xf32> to vector<8x8xf32>
    %115 = arith.truncf %114 : vector<8x8xf32> to vector<8x8xbf16>
    %116 = vector.extract_strided_slice %16 {offsets = [0, 88], sizes = [8, 8], strides = [1, 1]} : vector<8x96xf32> to vector<8x8xf32>
    %117 = arith.truncf %116 : vector<8x8xf32> to vector<8x8xbf16>
    "tpu.trace_start"() <{level = 10 : i32, message = "qd,kd->qk"}> : () -> ()
    %cst_32 = arith.constant dense<0.000000e+00> : vector<8x8xf32>
    %118 = tpu.matmul %113, %115, %cst_32 {dimension_numbers = #tpu.dot_dimension_numbers<[1], [1], [0], [0], [0, 0, 1, 0], [], []>} : vector<8x8xbf16>, vector<8x8xbf16>, vector<8x8xf32> -> vector<8x8xf32>
    "tpu.trace_stop"() : () -> ()
    %cst_33 = arith.constant 0.353553385 : f32
    %119 = vector.broadcast %cst_33 : f32 to vector<8x8xf32>
    %120 = arith.mulf %118, %119 : vector<8x8xf32>
    %121 = vector.broadcast %2 : vector<1x8xf32> to vector<8x8xf32>
    %122 = arith.addf %120, %121 : vector<8x8xf32>
    %cst_34 = arith.constant dense<0xFF800000> : vector<8xf32>
    %123 = vector.multi_reduction <maximumf>, %122, %cst_34 [1] : vector<8x8xf32> to vector<8xf32>
    %124 = vector.shape_cast %123 : vector<8xf32> to vector<8x1xf32>
    %125 = vector.broadcast %124 : vector<8x1xf32> to vector<8x8xf32>
    %126 = arith.subf %122, %125 : vector<8x8xf32>
    %127 = math.exp %126 : vector<8x8xf32>
    %cst_35 = arith.constant dense<0.000000e+00> : vector<8xf32>
    %128 = vector.multi_reduction <add>, %127, %cst_35 [1] : vector<8x8xf32> to vector<8xf32>
    %129 = vector.shape_cast %128 : vector<8xf32> to vector<8x1xf32>
    %130 = tpu.reciprocal %129 {approx = true} : vector<8x1xf32> -> vector<8x1xf32>
    %131 = arith.mulf %129, %130 : vector<8x1xf32>
    %cst_36 = arith.constant 2.000000e+00 : f32
    %132 = vector.broadcast %cst_36 : f32 to vector<8x1xf32>
    %133 = arith.subf %132, %131 : vector<8x1xf32>
    %134 = arith.mulf %130, %133 : vector<8x1xf32>
    %135 = vector.broadcast %134 : vector<8x1xf32> to vector<8x8xf32>
    %136 = arith.mulf %127, %135 : vector<8x8xf32>
    %137 = arith.truncf %136 : vector<8x8xf32> to vector<8x8xbf16>
    %cst_37 = arith.constant dense<0.000000e+00> : vector<8x8xf32>
    %138 = tpu.matmul %137, %117, %cst_37 {dimension_numbers = #tpu.dot_dimension_numbers<[1], [0], [0], [1], [0, 0, 1, 1], [], []>} : vector<8x8xbf16>, vector<8x8xbf16>, vector<8x8xf32> -> vector<8x8xf32>
    %139 = arith.truncf %138 : vector<8x8xf32> to vector<8x8xbf16>
    %140 = vector.extract_strided_slice %17 {offsets = [24, 0], sizes = [8, 32], strides = [1, 1]} : vector<32x32xbf16> to vector<8x32xbf16>
    %cst_38 = arith.constant dense<0.000000e+00> : vector<8x32xf32>
    %141 = tpu.matmul %139, %140, %cst_38 {dimension_numbers = #tpu.dot_dimension_numbers<[1], [0], [0], [1], [0, 0, 1, 1], [], []>} : vector<8x8xbf16>, vector<8x32xbf16>, vector<8x32xf32> -> vector<8x32xf32>
    %142 = arith.addf %111, %141 : vector<8x32xf32>
    %143 = vector.broadcast %6 : vector<1x32xf32> to vector<8x32xf32>
    %144 = arith.addf %142, %143 : vector<8x32xf32>
    %145 = arith.addf %144, %0 : vector<8x32xf32>
    %cst_39 = arith.constant dense<0.000000e+00> : vector<8xf32>
    %146 = vector.multi_reduction <add>, %145, %cst_39 [1] : vector<8x32xf32> to vector<8xf32>
    %147 = vector.shape_cast %146 : vector<8xf32> to vector<8x1xf32>
    %cst_40 = arith.constant 3.200000e+01 : f32
    %148 = vector.broadcast %cst_40 : f32 to vector<8x1xf32>
    %149 = arith.divf %147, %148 : vector<8x1xf32>
    %150 = vector.broadcast %149 : vector<8x1xf32> to vector<8x32xf32>
    %151 = arith.subf %145, %150 : vector<8x32xf32>
    %152 = arith.mulf %151, %151 : vector<8x32xf32>
    %cst_41 = arith.constant dense<0.000000e+00> : vector<8xf32>
    %153 = vector.multi_reduction <add>, %152, %cst_41 [1] : vector<8x32xf32> to vector<8xf32>
    %154 = vector.shape_cast %153 : vector<8xf32> to vector<8x1xf32>
    %cst_42 = arith.constant 3.200000e+01 : f32
    %155 = vector.broadcast %cst_42 : f32 to vector<8x1xf32>
    %156 = arith.divf %154, %155 : vector<8x1xf32>
    %157 = vector.broadcast %149 : vector<8x1xf32> to vector<8x32xf32>
    %158 = arith.subf %145, %157 : vector<8x32xf32>
    %cst_43 = arith.constant 9.99999996E-13 : f32
    %159 = vector.broadcast %cst_43 : f32 to vector<8x1xf32>
    %160 = arith.addf %156, %159 : vector<8x1xf32>
    %161 = math.rsqrt %160 : vector<8x1xf32>
    %162 = vector.broadcast %161 : vector<8x1xf32> to vector<8x32xf32>
    %163 = arith.mulf %158, %162 : vector<8x32xf32>
    %164 = vector.broadcast %7 : vector<1x32xf32> to vector<8x32xf32>
    %165 = arith.mulf %163, %164 : vector<8x32xf32>
    %166 = vector.broadcast %8 : vector<1x32xf32> to vector<8x32xf32>
    %167 = arith.addf %165, %166 : vector<8x32xf32>
    %168 = arith.truncf %167 : vector<8x32xf32> to vector<8x32xbf16>
    %c0_44 = arith.constant 0 : index
    %c0_45 = arith.constant 0 : index
    %169 = vector.load %arg5[%c0_44, %c0_45] : memref<32x64xbf16, #tpu.memory_space<vmem>>, vector<32x64xbf16>
    %cst_46 = arith.constant dense<0.000000e+00> : vector<8x64xf32>
    %170 = tpu.matmul %168, %169, %cst_46 {dimension_numbers = #tpu.dot_dimension_numbers<[1], [0], [0], [1], [0, 0, 1, 1], [], []>} : vector<8x32xbf16>, vector<32x64xbf16>, vector<8x64xf32> -> vector<8x64xf32>
    %171 = vector.broadcast %5 : vector<1x64xf32> to vector<8x64xf32>
    %172 = arith.addf %170, %171 : vector<8x64xf32>
    %cst_47 = arith.constant 5.000000e-01 : f32
    %173 = vector.broadcast %cst_47 : f32 to vector<8x64xf32>
    %174 = arith.mulf %172, %173 : vector<8x64xf32>
    %cst_48 = arith.constant 1.41421354 : f32
    %175 = vector.broadcast %cst_48 : f32 to vector<8x64xf32>
    %176 = arith.divf %172, %175 : vector<8x64xf32>
    %cst_49 = arith.constant 0.000000e+00 : f32
    %177 = vector.broadcast %cst_49 : f32 to vector<8x64xf32>
    %178 = arith.cmpf oge, %176, %177 : vector<8x64xf32>
    %cst_50 = arith.constant 1.000000e+00 : f32
    %cst_51 = arith.constant -1.000000e+00 : f32
    %179 = vector.broadcast %cst_50 : f32 to vector<8x64xf32>
    %180 = vector.broadcast %cst_51 : f32 to vector<8x64xf32>
    %181 = arith.select %178, %179, %180 : vector<8x64xi1>, vector<8x64xf32>
    %182 = math.absf %176 : vector<8x64xf32>
    %cst_52 = arith.constant 0.327591091 : f32
    %183 = vector.broadcast %cst_52 : f32 to vector<8x64xf32>
    %184 = arith.mulf %183, %182 : vector<8x64xf32>
    %cst_53 = arith.constant 1.000000e+00 : f32
    %185 = vector.broadcast %cst_53 : f32 to vector<8x64xf32>
    %186 = arith.addf %185, %184 : vector<8x64xf32>
    %187 = tpu.reciprocal %186 {approx = true} : vector<8x64xf32> -> vector<8x64xf32>
    %188 = arith.mulf %186, %187 : vector<8x64xf32>
    %cst_54 = arith.constant 2.000000e+00 : f32
    %189 = vector.broadcast %cst_54 : f32 to vector<8x64xf32>
    %190 = arith.subf %189, %188 : vector<8x64xf32>
    %191 = arith.mulf %187, %190 : vector<8x64xf32>
    %cst_55 = arith.constant 1.06140542 : f32
    %192 = vector.broadcast %cst_55 : f32 to vector<8x64xf32>
    %193 = arith.mulf %192, %191 : vector<8x64xf32>
    %cst_56 = arith.constant -1.45315206 : f32
    %194 = vector.broadcast %cst_56 : f32 to vector<8x64xf32>
    %195 = arith.addf %193, %194 : vector<8x64xf32>
    %196 = arith.mulf %195, %191 : vector<8x64xf32>
    %cst_57 = arith.constant 1.42141378 : f32
    %197 = vector.broadcast %cst_57 : f32 to vector<8x64xf32>
    %198 = arith.addf %196, %197 : vector<8x64xf32>
    %199 = arith.mulf %198, %191 : vector<8x64xf32>
    %cst_58 = arith.constant -0.284496725 : f32
    %200 = vector.broadcast %cst_58 : f32 to vector<8x64xf32>
    %201 = arith.addf %199, %200 : vector<8x64xf32>
    %202 = arith.mulf %201, %191 : vector<8x64xf32>
    %cst_59 = arith.constant 0.254829586 : f32
    %203 = vector.broadcast %cst_59 : f32 to vector<8x64xf32>
    %204 = arith.addf %202, %203 : vector<8x64xf32>
    %205 = arith.mulf %204, %191 : vector<8x64xf32>
    %cst_60 = arith.constant 0.000000e+00 : f32
    %206 = vector.broadcast %cst_60 : f32 to vector<8x64xf32>
    %207 = arith.subf %206, %182 : vector<8x64xf32>
    %208 = arith.mulf %207, %182 : vector<8x64xf32>
    %209 = math.exp %208 : vector<8x64xf32>
    %210 = arith.mulf %205, %209 : vector<8x64xf32>
    %cst_61 = arith.constant 1.000000e+00 : f32
    %211 = vector.broadcast %cst_61 : f32 to vector<8x64xf32>
    %212 = arith.subf %211, %210 : vector<8x64xf32>
    %213 = arith.mulf %181, %212 : vector<8x64xf32>
    %cst_62 = arith.constant 1.000000e+00 : f32
    %214 = vector.broadcast %cst_62 : f32 to vector<8x64xf32>
    %215 = arith.addf %214, %213 : vector<8x64xf32>
    %216 = arith.mulf %174, %215 : vector<8x64xf32>
    %217 = arith.truncf %216 : vector<8x64xf32> to vector<8x64xbf16>
    %c0_63 = arith.constant 0 : index
    %c0_64 = arith.constant 0 : index
    %218 = vector.load %arg6[%c0_63, %c0_64] : memref<64x32xbf16, #tpu.memory_space<vmem>>, vector<64x32xbf16>
    %cst_65 = arith.constant dense<0.000000e+00> : vector<8x32xf32>
    %219 = tpu.matmul %217, %218, %cst_65 {dimension_numbers = #tpu.dot_dimension_numbers<[1], [0], [0], [1], [0, 0, 1, 1], [], []>} : vector<8x64xbf16>, vector<64x32xbf16>, vector<8x32xf32> -> vector<8x32xf32>
    %220 = vector.broadcast %9 : vector<1x32xf32> to vector<8x32xf32>
    %221 = arith.addf %219, %220 : vector<8x32xf32>
    %222 = arith.addf %221, %167 : vector<8x32xf32>
    %cst_66 = arith.constant dense<0.000000e+00> : vector<8xf32>
    %223 = vector.multi_reduction <add>, %222, %cst_66 [1] : vector<8x32xf32> to vector<8xf32>
    %224 = vector.shape_cast %223 : vector<8xf32> to vector<8x1xf32>
    %cst_67 = arith.constant 3.200000e+01 : f32
    %225 = vector.broadcast %cst_67 : f32 to vector<8x1xf32>
    %226 = arith.divf %224, %225 : vector<8x1xf32>
    %227 = vector.broadcast %226 : vector<8x1xf32> to vector<8x32xf32>
    %228 = arith.subf %222, %227 : vector<8x32xf32>
    %229 = arith.mulf %228, %228 : vector<8x32xf32>
    %cst_68 = arith.constant dense<0.000000e+00> : vector<8xf32>
    %230 = vector.multi_reduction <add>, %229, %cst_68 [1] : vector<8x32xf32> to vector<8xf32>
    %231 = vector.shape_cast %230 : vector<8xf32> to vector<8x1xf32>
    %cst_69 = arith.constant 3.200000e+01 : f32
    %232 = vector.broadcast %cst_69 : f32 to vector<8x1xf32>
    %233 = arith.divf %231, %232 : vector<8x1xf32>
    %234 = vector.broadcast %226 : vector<8x1xf32> to vector<8x32xf32>
    %235 = arith.subf %222, %234 : vector<8x32xf32>
    %cst_70 = arith.constant 9.99999996E-13 : f32
    %236 = vector.broadcast %cst_70 : f32 to vector<8x1xf32>
    %237 = arith.addf %233, %236 : vector<8x1xf32>
    %238 = math.rsqrt %237 : vector<8x1xf32>
    %239 = vector.broadcast %238 : vector<8x1xf32> to vector<8x32xf32>
    %240 = arith.mulf %235, %239 : vector<8x32xf32>
    %241 = vector.broadcast %10 : vector<1x32xf32> to vector<8x32xf32>
    %242 = arith.mulf %240, %241 : vector<8x32xf32>
    %243 = vector.broadcast %11 : vector<1x32xf32> to vector<8x32xf32>
    %244 = arith.addf %242, %243 : vector<8x32xf32>
    %c0_71 = arith.constant 0 : index
    %c0_72 = arith.constant 0 : index
    %245 = vector.load %arg8[%c0_71, %c0_72] : memref<8x32xf32, #tpu.memory_space<vmem>>, vector<8x32xf32>
    tpu.vector_store %arg8[%c0_71, %c0_72], %244 {strides = array<i32>} : memref<8x32xf32, #tpu.memory_space<vmem>>, vector<8x32xf32>,
    return
  }
  func.func @transform_0(%arg0: i32) -> (i32, i32) {
    %c0_i32 = arith.constant 0 : i32
    %c0_i32_0 = arith.constant 0 : i32
    return %arg0, %c0_i32 : i32, i32
  }
  func.func @transform_1(%arg0: i32) -> (i32, i32, i32) {
    %c0_i32 = arith.constant 0 : i32
    %c0_i32_0 = arith.constant 0 : i32
    %c0_i32_1 = arith.constant 0 : i32
    return %arg0, %c0_i32, %c0_i32_0 : i32, i32, i32
  }
  func.func @transform_2(%arg0: i32) -> (i32, i32) {
    %c0_i32 = arith.constant 0 : i32
    %c0_i32_0 = arith.constant 0 : i32
    %c0_i32_1 = arith.constant 0 : i32
    return %c0_i32, %c0_i32_0 : i32, i32
  }
  func.func @transform_3(%arg0: i32) -> (i32, i32) {
    %c0_i32 = arith.constant 0 : i32
    %c0_i32_0 = arith.constant 0 : i32
    %c0_i32_1 = arith.constant 0 : i32
    return %c0_i32, %c0_i32_0 : i32, i32
  }
  func.func @transform_4(%arg0: i32) -> (i32, i32) {
    %c0_i32 = arith.constant 0 : i32
    %c0_i32_0 = arith.constant 0 : i32
    %c0_i32_1 = arith.constant 0 : i32
    return %c0_i32, %c0_i32_0 : i32, i32
  }
  func.func @transform_5(%arg0: i32) -> (i32, i32) {
    %c0_i32 = arith.constant 0 : i32
    %c0_i32_0 = arith.constant 0 : i32
    %c0_i32_1 = arith.constant 0 : i32
    return %c0_i32, %c0_i32_0 : i32, i32
  }
  func.func @transform_6(%arg0: i32) -> (i32, i32) {
    %c0_i32 = arith.constant 0 : i32
    %c0_i32_0 = arith.constant 0 : i32
    %c0_i32_1 = arith.constant 0 : i32
    return %c0_i32, %c0_i32_0 : i32, i32
  }
  func.func @transform_7(%arg0: i32) -> (i32, i32) {
    %c0_i32 = arith.constant 0 : i32
    %c0_i32_0 = arith.constant 0 : i32
    return %arg0, %c0_i32 : i32, i32
  }
}

</mosaic_0001>

<llo_original>
// kernel: tpu_custom_call.1
$region0: #{tpu_custom_call.1}
  #allocation0 [shape = 'u32[]', space=smem, size = 0x4, offset = 0x4, fixed_abs, tag = 'smem constant byte address 0x4 - core index']
  #allocation1 [shape = 'u32[144,128]{1,0:T(1,128)}', space=vmem, size = 0x12000, scoped, tag = 'internal scratch']
  %s0 = inlined_call_operand.vmem [shape: f32[16,32], index: 0, kind: input, shape index: {}]
  %s1 = inlined_call_operand.vmem [shape: f32[2,1,8], index: 1, kind: input, shape index: {}]
  %s2 = inlined_call_operand.vmem [shape: bf16[32,96], index: 2, kind: input, shape index: {}]
  %s3 = inlined_call_operand.vmem [shape: bf16[32,32], index: 3, kind: input, shape index: {}]
  %s4 = inlined_call_operand.hbm [shape: bf16[32,64], index: 4, kind: input, shape index: {}]
  %s5 = inlined_call_operand.vmem [shape: bf16[64,32], index: 5, kind: input, shape index: {}]
  %s6 = inlined_call_operand.hbm [shape: f32[8,96], index: 6, kind: input, shape index: {}]
  %s7 = inlined_call_operand.hbm [shape: f32[16,32], index: 7, kind: output, shape index: {}]
  %s8 = sld [smem:[#allocation0]]
  $region69: #{tpu_custom_call.1} parent=0
    _
  %s10 = ssub.s32 1, %s8
  %s11 = scalar_select 0, %s10, %s8
  $region1: #{tpu_custom_call.1} parent=0
    #allocation2 [shape = 'u8[8192]{0}', space=vmem, size = 0x2000, scoped, tag = 'input window, operand 4, single buffered']
    #allocation3 [shape = 's32[2]{0}', space=sflag, size = 0x8, scoped, tag = 'scoped memory for tpu_custom_call.1']
    #allocation4 [shape = 's32[2]{0}', space=sflag, size = 0x8, scoped, tag = 'scoped memory for tpu_custom_call.1']
    #allocation5 [shape = 'u8[4096]{0}', space=vmem, size = 0x1000, scoped, tag = 'input window, operand 6, single buffered']
    #allocation6 [shape = 's32[1]{0}', space=sflag, size = 0x4, scoped, tag = 'scoped memory for tpu_custom_call.1']
    #allocation7 [shape = 'u8[8192]{0}', space=vmem, size = 0x2000, scoped, tag = 'output window, operand 0']
    %12 = vsyncpa [#allocation3], 0
    %13 = vsyncpa [#allocation6], 0
    %14 = vsyncpa [#allocation4], 0
    %s15 = scalar_lea.sflag [#allocation4], 1
    %16 = vsyncpa %s15, 0
    loop: start=0, step=1, limit=4
    $region2: #{tpu_custom_call.1} parent=1 // loop_pre_header
      _
    $region3: #{tpu_custom_call.1} parent=1 // loop_header
      %s18 = sphi 0, %s22
      %p19 = scmp.ge.s32.totalorder %s18, 4
      %s28 = sphi 0, %s30
      %s31 = sphi 0, %s28
      %s32 = sphi 0, %s31
      %s48 = sphi 0, %s32
      %s54 = sphi 0, %s56
      %s57 = sphi 0, %s54
      %s58 = sphi 0, %s57
      %s74 = sphi 0, %s58
      %s78 = sphi 0, %s78
      %s80 = sphi 0, %s78
      %s81 = sphi 0, %s80
      %s95 = sphi 0, %s81
      %s99 = sphi 0, %s99
      %s101 = sphi 0, %s99
      %s102 = sphi 0, %s101
      %s116 = sphi 0, %s102
      %s120 = sphi 0, %s120
      %s122 = sphi 0, %s120
      %s123 = sphi 0, %s122
      %s137 = sphi 0, %s123
      %s141 = sphi 0, %s141
      %s143 = sphi 0, %s141
      %s144 = sphi 0, %s143
      %s158 = sphi 0, %s144
      %s162 = sphi 0, %s162
      %s164 = sphi 0, %s162
      %s165 = sphi 0, %s164
      %s179 = sphi 0, %s165
      %s185 = sphi 0, %s187
      %s188 = sphi 0, %s185
      %s189 = sphi 0, %s188
      %s205 = sphi 0, %s189
    $region4: #{tpu_custom_call.1} parent=1 // loop_header_branch
      %21 = sbr.rel (%p19) target = $region8
    $region5: #{tpu_custom_call.1} parent=1 // loop_body
      %s23 = ssub.s32 %s18, 1
      %s24 = ssub.s32 %s18, 2
      %s25 = sadd.s32 %s18, 1
      %s26 = ssub.s32 %s18, %s25
      %p27 = scmp.eq.s32.totalorder %s26, 0
      %s29 = sadd.s32 %s28, 1
      %s30 = scalar_select %p27, %s28, %s29
      %p33 = pneg %p27
      %p34 = scmp.eq.s32.totalorder %s18, 1
      %p35 = por %p33, %p34
      %p36 = scmp.ne.s32.totalorder %s28, %s31
      %p37 = scmp.eq.s32.totalorder %s18, 0
      %p38 = por %p36, %p37
      %p39 = scmp.ne.s32.totalorder %s28, %s31
      %p40 = scmp.eq.s32.totalorder %s23, 1
      %p41 = por %p39, %p40
      %p42 = scmp.ne.s32.totalorder %s31, %s32
      %p43 = scmp.eq.s32.totalorder %s23, 0
      %p44 = por %p42, %p43
      %p45 = scmp.ne.s32.totalorder %s31, %s32
      %p46 = scmp.eq.s32.totalorder %s24, 1
      %p47 = por %p45, %p46
      %p49 = scmp.ne.s32.totalorder %s32, %s48
      %p50 = scmp.eq.s32.totalorder %s24, 0
      %p51 = por %p49, %p50
      %s52 = ssub.s32 %s18, %s25
      %p53 = scmp.eq.s32.totalorder %s52, 0
      %s55 = sadd.s32 %s54, 1
      %s56 = scalar_select %p53, %s54, %s55
      %p59 = pneg %p53
      %p60 = scmp.eq.s32.totalorder %s18, 1
      %p61 = por %p59, %p60
      %p62 = scmp.ne.s32.totalorder %s54, %s57
      %p63 = scmp.eq.s32.totalorder %s18, 0
      %p64 = por %p62, %p63
      %p65 = scmp.ne.s32.totalorder %s54, %s57
      %p66 = scmp.eq.s32.totalorder %s23, 1
      %p67 = por %p65, %p66
      %p68 = scmp.ne.s32.totalorder %s57, %s58
      %p69 = scmp.eq.s32.totalorder %s23, 0
      %p70 = por %p68, %p69
      %p71 = scmp.ne.s32.totalorder %s57, %s58
      %p72 = scmp.eq.s32.totalorder %s24, 1
      %p73 = por %p71, %p72
      %p75 = scmp.ne.s32.totalorder %s58, %s74
      %p76 = scmp.eq.s32.totalorder %s24, 0
      %p77 = por %p75, %p76
      %s79 = sadd.s32 %s78, 1
      %p82 = scmp.eq.s32.totalorder %s18, 1
      %p83 = scmp.ne.s32.totalorder %s78, %s80
      %p84 = scmp.eq.s32.totalorder %s18, 0
      %p85 = por %p83, %p84
      %p86 = scmp.ne.s32.totalorder %s78, %s80
      %p87 = scmp.eq.s32.totalorder %s23, 1
      %p88 = por %p86, %p87
      %p89 = scmp.ne.s32.totalorder %s80, %s81
      %p90 = scmp.eq.s32.totalorder %s23, 0
      %p91 = por %p89, %p90
      %p92 = scmp.ne.s32.totalorder %s80, %s81
      %p93 = scmp.eq.s32.totalorder %s24, 1
      %p94 = por %p92, %p93
      %p96 = scmp.ne.s32.totalorder %s81, %s95
      %p97 = scmp.eq.s32.totalorder %s24, 0
      %p98 = por %p96, %p97
      %s100 = sadd.s32 %s99, 1
      %p103 = scmp.eq.s32.totalorder %s18, 1
      %p104 = scmp.ne.s32.totalorder %s99, %s101
      %p105 = scmp.eq.s32.totalorder %s18, 0
      %p106 = por %p104, %p105
      %p107 = scmp.ne.s32.totalorder %s99, %s101
      %p108 = scmp.eq.s32.totalorder %s23, 1
      %p109 = por %p107, %p108
      %p110 = scmp.ne.s32.totalorder %s101, %s102
      %p111 = scmp.eq.s32.totalorder %s23, 0
      %p112 = por %p110, %p111
      %p113 = scmp.ne.s32.totalorder %s101, %s102
      %p114 = scmp.eq.s32.totalorder %s24, 1
      %p115 = por %p113, %p114
      %p117 = scmp.ne.s32.totalorder %s102, %s116
      %p118 = scmp.eq.s32.totalorder %s24, 0
      %p119 = por %p117, %p118
      %s121 = sadd.s32 %s120, 1
      %p124 = scmp.eq.s32.totalorder %s18, 1
      %p125 = scmp.ne.s32.totalorder %s120, %s122
      %p126 = scmp.eq.s32.totalorder %s18, 0
      %p127 = por %p125, %p126
      %p128 = scmp.ne.s32.totalorder %s120, %s122
      %p129 = scmp.eq.s32.totalorder %s23, 1
      %p130 = por %p128, %p129
      %p131 = scmp.ne.s32.totalorder %s122, %s123
      %p132 = scmp.eq.s32.totalorder %s23, 0
      %p133 = por %p131, %p132
      %p134 = scmp.ne.s32.totalorder %s122, %s123
      %p135 = scmp.eq.s32.totalorder %s24, 1
      %p136 = por %p134, %p135
      %p138 = scmp.ne.s32.totalorder %s123, %s137
      %p139 = scmp.eq.s32.totalorder %s24, 0
      %p140 = por %p138, %p139
      %s142 = sadd.s32 %s141, 1
      %p145 = scmp.eq.s32.totalorder %s18, 1
      %p146 = scmp.ne.s32.totalorder %s141, %s143
      %p147 = scmp.eq.s32.totalorder %s18, 0
      %p148 = por %p146, %p147
      %p149 = scmp.ne.s32.totalorder %s141, %s143
      %p150 = scmp.eq.s32.totalorder %s23, 1
      %p151 = por %p149, %p150
      %p152 = scmp.ne.s32.totalorder %s143, %s144
      %p153 = scmp.eq.s32.totalorder %s23, 0
      %p154 = por %p152, %p153
      %p155 = scmp.ne.s32.totalorder %s143, %s144
      %p156 = scmp.eq.s32.totalorder %s24, 1
      %p157 = por %p155, %p156
      %p159 = scmp.ne.s32.totalorder %s144, %s158
      %p160 = scmp.eq.s32.totalorder %s24, 0
      %p161 = por %p159, %p160
      %s163 = sadd.s32 %s162, 1
      %p166 = scmp.eq.s32.totalorder %s18, 1
      %p167 = scmp.ne.s32.totalorder %s162, %s164
      %p168 = scmp.eq.s32.totalorder %s18, 0
      %p169 = por %p167, %p168
      %p170 = scmp.ne.s32.totalorder %s162, %s164
      %p171 = scmp.eq.s32.totalorder %s23, 1
      %p172 = por %p170, %p171
      %p173 = scmp.ne.s32.totalorder %s164, %s165
      %p174 = scmp.eq.s32.totalorder %s23, 0
      %p175 = por %p173, %p174
      %p176 = scmp.ne.s32.totalorder %s164, %s165
      %p177 = scmp.eq.s32.totalorder %s24, 1
      %p178 = por %p176, %p177
      %p180 = scmp.ne.s32.totalorder %s165, %s179
      %p181 = scmp.eq.s32.totalorder %s24, 0
      %p182 = por %p180, %p181
      %s183 = ssub.s32 %s18, %s25
      %p184 = scmp.eq.s32.totalorder %s183, 0
      %s186 = sadd.s32 %s185, 1
      %s187 = scalar_select %p184, %s185, %s186
      %p190 = pneg %p184
      %p191 = scmp.eq.s32.totalorder %s18, 1
      %p192 = por %p190, %p191
      %p193 = scmp.ne.s32.totalorder %s185, %s188
      %p194 = scmp.eq.s32.totalorder %s18, 0
      %p195 = por %p193, %p194
      %p196 = scmp.ne.s32.totalorder %s185, %s188
      %p197 = scmp.eq.s32.totalorder %s23, 1
      %p198 = por %p196, %p197
      %p199 = scmp.ne.s32.totalorder %s188, %s189
      %p200 = scmp.eq.s32.totalorder %s23, 0
      %p201 = por %p199, %p200
      %p202 = scmp.ne.s32.totalorder %s188, %s189
      %p203 = scmp.eq.s32.totalorder %s24, 1
      %p204 = por %p202, %p203
      %p206 = scmp.ne.s32.totalorder %s189, %s205
      %p207 = scmp.eq.s32.totalorder %s24, 0
      %p208 = por %p206, %p207
      %p209 = scmp.le.s32.totalorder 1, %s18
      %p210 = scmp.lt.s32.totalorder %s18, 3
      %p211 = pnand %p209, %p210
      %p212 = pneg %p211
      // Predicated region
      $region9: #{tpu_custom_call.1} parent=5 // pred_check
        _
      $region10: #{tpu_custom_call.1} parent=5 // pred_check_branch
        %214 = sbr.rel (%p211) target = $region12
      $region11: #{tpu_custom_call.1} parent=5 // pred_region
        %s215 = ssub.s32 %s18, 1
        // Predicated region
        $region13: #{tpu_custom_call.1} parent=11 // pred_check
          %p216 = pneg %p91
        $region14: #{tpu_custom_call.1} parent=11 // pred_check_branch
          %218 = sbr.rel (%p216) target = $region16
        $region15: #{tpu_custom_call.1} parent=11 // pred_region
          _
        $region16: #{tpu_custom_call.1} parent=11 // pred_fallthru
          _
        // Predicated region
        $region17: #{tpu_custom_call.1} parent=11 // pred_check
          %p219 = pneg %p112
        $region18: #{tpu_custom_call.1} parent=11 // pred_check_branch
          %221 = sbr.rel (%p219) target = $region20
        $region19: #{tpu_custom_call.1} parent=11 // pred_region
          _
        $region20: #{tpu_custom_call.1} parent=11 // pred_fallthru
          _
        // Predicated region
        $region21: #{tpu_custom_call.1} parent=11 // pred_check
          %p222 = pneg %p133
        $region22: #{tpu_custom_call.1} parent=11 // pred_check_branch
          %224 = sbr.rel (%p222) target = $region24
        $region23: #{tpu_custom_call.1} parent=11 // pred_region
          %s226 = ssub.s32 256, 256
          %227 = vsyncadd [#allocation3], %s226
          %s228 = sshll.u32 [#allocation2], 4
          %s229 = int_to_ptr.vmem [resolvable:$true] %s228
          %234 = dma.hbm_to_vmem [thread:$0]  %s4, 256, %s229, [#allocation3], 64, 64, 4
        $region24: #{tpu_custom_call.1} parent=11 // pred_fallthru
          _
        // Predicated region
        $region25: #{tpu_custom_call.1} parent=11 // pred_check
          %p235 = pneg %p154
        $region26: #{tpu_custom_call.1} parent=11 // pred_check_branch
          %237 = sbr.rel (%p235) target = $region28
        $region27: #{tpu_custom_call.1} parent=11 // pred_region
          _
        $region28: #{tpu_custom_call.1} parent=11 // pred_fallthru
          _
        // Predicated region
        $region29: #{tpu_custom_call.1} parent=11 // pred_check
          %p238 = pneg %p175
        $region30: #{tpu_custom_call.1} parent=11 // pred_check_branch
          %240 = sbr.rel (%p238) target = $region32
        $region31: #{tpu_custom_call.1} parent=11 // pred_region
          %s242 = ssub.s32 128, 128
          %243 = vsyncadd [#allocation6], %s242
          %s245 = sshll.u32 [#allocation5], 4
          %s246 = int_to_ptr.vmem [resolvable:$true] %s245
          %248 = dma.hbm_to_vmem [thread:$0]  %s6, 128, %s246, [#allocation6]
        $region32: #{tpu_custom_call.1} parent=11 // pred_fallthru
          _
      $region12: #{tpu_custom_call.1} parent=5 // pred_fallthru
        _
      %p249 = scmp.lt.s32.totalorder %s18, 2
      // Predicated region
      $region33: #{tpu_custom_call.1} parent=5 // pred_check
        %p250 = pneg %p249
      $region34: #{tpu_custom_call.1} parent=5 // pred_check_branch
        %252 = sbr.rel (%p250) target = $region36
      $region35: #{tpu_custom_call.1} parent=5 // pred_region
        // Predicated region
        $region37: #{tpu_custom_call.1} parent=35 // pred_check
          %p253 = pneg %p38
        $region38: #{tpu_custom_call.1} parent=35 // pred_check_branch
          %255 = sbr.rel (%p253) target = $region40
        $region39: #{tpu_custom_call.1} parent=35 // pred_region
          %p256 = scmp.lt.s32.totalorder %s18, 1
          %s257 = scalar_select %p256, %s18, 1
          %s258 = smul.addr %s257, 8
          %s259 = scalar_lea.vmem %s0, %s258
        $region40: #{tpu_custom_call.1} parent=35 // pred_fallthru
          _
        // Predicated region
        $region41: #{tpu_custom_call.1} parent=35 // pred_check
          %p260 = pneg %p64
        $region42: #{tpu_custom_call.1} parent=35 // pred_check_branch
          %262 = sbr.rel (%p260) target = $region44
        $region43: #{tpu_custom_call.1} parent=35 // pred_region
          %p263 = scmp.lt.s32.totalorder %s18, 1
          %s264 = scalar_select %p263, %s18, 1
          %s265 = scalar_lea.vmem %s1, %s264
        $region44: #{tpu_custom_call.1} parent=35 // pred_fallthru
          _
      $region36: #{tpu_custom_call.1} parent=5 // pred_fallthru
        _
      %p266 = scmp.le.s32.totalorder 1, %s18
      %p267 = scmp.lt.s32.totalorder %s18, 3
      %p268 = pnand %p266, %p267
      %p269 = pneg %p268
      // Predicated region
      $region45: #{tpu_custom_call.1} parent=5 // pred_check
        _
      $region46: #{tpu_custom_call.1} parent=5 // pred_check_branch
        %271 = sbr.rel (%p268) target = $region48
      $region47: #{tpu_custom_call.1} parent=5 // pred_region
        %s272 = ssub.s32 %s18, 1
        // Predicated region
        $region49: #{tpu_custom_call.1} parent=47 // pred_check
          %p273 = pneg %p133
        $region50: #{tpu_custom_call.1} parent=47 // pred_check_branch
          %275 = sbr.rel (%p273) target = $region52
        $region51: #{tpu_custom_call.1} parent=47 // pred_region
          %276 = dma.done [#allocation3], 256
        $region52: #{tpu_custom_call.1} parent=47 // pred_fallthru
          _
        // Predicated region
        $region53: #{tpu_custom_call.1} parent=47 // pred_check
          %p277 = pneg %p175
        $region54: #{tpu_custom_call.1} parent=47 // pred_check_branch
          %279 = sbr.rel (%p277) target = $region56
        $region55: #{tpu_custom_call.1} parent=47 // pred_region
          %280 = dma.done [#allocation6], 128
        $region56: #{tpu_custom_call.1} parent=47 // pred_fallthru
          _
        %p281 = scmp.lt.s32.totalorder %s23, 1
        %s282 = scalar_select %p281, %s23, 1
        %s283 = smul.addr %s282, 8
        %s284 = scalar_lea.vmem %s0, %s283
        %p285 = pneg %p44
        %p286 = pneg %p41
        %p287 = scmp.lt.s32.totalorder %s23, 1
        %s288 = scalar_select %p287, %s23, 1
        %s289 = scalar_lea.vmem %s1, %s288
        %p290 = pneg %p70
        %p291 = pneg %p67
        %p292 = pneg %p91
        %p293 = pneg %p88
        %p294 = pneg %p112
        %p295 = pneg %p109
        %p296 = pneg %p133
        %p297 = pneg %p130
        %p298 = pneg %p154
        %p299 = pneg %p151
        %p300 = pneg %p175
        %p301 = pneg %p172
        %p302 = pneg %p201
        %p303 = pneg %p198
        %s304 = sand.u32 %s188, 1
        %s305 = scalar_lea.sflag [#allocation4], %s304
        %s306 = sand.u32 %s188, 1
        %s307 = smul.addr %s306, 8
        %s308 = scalar_lea.vmem [#allocation7], %s307
        %p309 = scmp.lt.s32.totalorder %s23, 1
        %s310 = scalar_select %p309, %s23, 1
        %s311 = smul.addr %s310, 8
        %s312 = scalar_lea.vmem %s0, %s311
        %p313 = scmp.lt.s32.totalorder %s23, 1
        %s314 = scalar_select %p313, %s23, 1
        %s315 = scalar_lea.vmem %s1, %s314
        %v317 = vld [vmem:[%s312] sm:$0xff]
        %v318 = vld [vmem:[%s315] sm:$0x1]
        %v319 = vld [vmem:[#allocation5] sm:$0xff]
        %v320 = vpack.c.bf16 %v317, %v317
        %v321 = vld [vmem:[%s2] sm:$0xf]
        %v322 = vld [vmem:[%s2 + $0x4] sm:$0xf]
        %v323 = vld [vmem:[%s2 + $0x8] sm:$0xf]
        %v324 = vld [vmem:[%s2 + $0xc] sm:$0xf]
        %v325 = vlaneseq
        %v326 = vshrl.u32 %v325, 7
        %v327 = vsub.s32 0, %v326
        %v328 = vrot.slane %v319, %v327
        %v333 = vunpack.c.l.b16 %v321
        %v334 = vunpack.c.l.b16 %v322
        %v335 = vunpack.c.l.b16 %v323
        %v336 = vunpack.c.l.b16 %v324
        %v337 = vpack.c.b16 %v334, %v333
        %v338 = vpack.c.b16 %v336, %v335
        %vm341 = vcmask 261120
        %v343 = vsel %vm341, %v320, 0
        %345 = vmatprep.subr.bf16.mxu0 0
        %346 = vmatpush1.bf16.msra.mxu0 %v337
        %347 = vmatprep.subr.bf16.mxu0 0
        %348 = vmatpush1.bf16.msra.mxu0 %v338
        %349 = vmatprep.subr.bf16.mxu0 0
        %350 = vmatpush1.bf16.msra.mxu0 0
        %351 = vmatprep.subr.bf16.mxu0 0
        %352 = vmatpush1.bf16.msra.mxu0 0
        %353 = vmatprep.subr.bf16.mxu0 0
        %354 = vmatpush1.bf16.msra.mxu0 0
        %355 = vmatprep.subr.bf16.mxu0 0
        %356 = vmatpush1.bf16.msra.mxu0 0
        %357 = vmatprep.subr.bf16.mxu0 0
        %358 = vmatpush1.bf16.msra.mxu0 0
        %359 = vmatprep.subr.bf16.mxu0 0
        %360 = vmatpush1.bf16.msra.mxu0 0
        %361 = vmatprep.subr.bf16.mxu0 0
        %362 = vmatpush1.bf16.msra.mxu0 0
        %363 = vmatprep.subr.bf16.mxu0 0
        %364 = vmatpush1.bf16.msra.mxu0 0
        %365 = vmatprep.subr.bf16.mxu0 0
        %366 = vmatpush1.bf16.msra.mxu0 0
        %367 = vmatprep.subr.bf16.mxu0 0
        %368 = vmatpush1.bf16.msra.mxu0 0
        %369 = vmatprep.subr.bf16.mxu0 0
        %370 = vmatpush1.bf16.msra.mxu0 0
        %371 = vmatprep.subr.bf16.mxu0 0
        %372 = vmatpush1.bf16.msra.mxu0 0
        %373 = vmatprep.subr.bf16.mxu0 0
        %374 = vmatpush1.bf16.msra.mxu0 0
        %375 = vmatprep.subr.bf16.mxu0 0
        %376 = vmatpush1.bf16.msra.mxu0 0
        %377 = vmatprep.mubr.bf16.mxu0 0
        %378 = vmatmul.mubr.bf16.gmra.mrb[0].mxu0 %v343
        %v379 = vpop.f32.mrb[0].mxu0
        %v380 = vadd.f32 %v328, %v379
        %v381 = vpop.f32.mrb[0].mxu0
        %v382 = vpop.f32.mrb[0].mxu0
        %v383 = vpop.f32.mrb[0].mxu0
        %384 = vdwg.mxu0
        %v385 = vld [vmem:[%s3] sm:$0xf]
        %v386 = vld [vmem:[%s3 + $0x4] sm:$0xf]
        %v387 = vld [vmem:[%s3 + $0x8] sm:$0xf]
        %v388 = vld [vmem:[%s3 + $0xc] sm:$0xf]
        %v389 = vpack.c.bf16 %v380, %v380
        %391 = vrot.lane.b32.xlu0 %v389, 96
        %v392 = vpop.permute.xlu0 %391
        %vm393 = vcmask 64512
        %v395 = vsel %vm393, %v389, 0
        %v398 = vsel %vm393, %v392, 0
        %400 = vmatprep.subr.bf16.mxu0 0
        %401 = vmatpush1.bf16.xpose.msra.mxu0 %v398
        %402 = vmatprep.subr.bf16.mxu0 0
        %403 = vmatpush1.bf16.xpose.msra.mxu0 0
        %404 = vmatprep.subr.bf16.mxu0 0
        %405 = vmatpush1.bf16.xpose.msra.mxu0 0
        %406 = vmatprep.subr.bf16.mxu0 0
        %407 = vmatpush1.bf16.xpose.msra.mxu0 0
        %408 = vmatprep.subr.bf16.mxu0 0
        %409 = vmatpush1.bf16.xpose.msra.mxu0 0
        %410 = vmatprep.subr.bf16.mxu0 0
        %411 = vmatpush1.bf16.xpose.msra.mxu0 0
        %412 = vmatprep.subr.bf16.mxu0 0
        %413 = vmatpush1.bf16.xpose.msra.mxu0 0
        %414 = vmatprep.subr.bf16.mxu0 0
        %415 = vmatpush1.bf16.xpose.msra.mxu0 0
        %416 = vmatprep.subr.bf16.mxu0 0
        %417 = vmatpush1.bf16.xpose.msra.mxu0 0
        %418 = vmatprep.subr.bf16.mxu0 0
        %419 = vmatpush1.bf16.xpose.msra.mxu0 0
        %420 = vmatprep.subr.bf16.mxu0 0
        %421 = vmatpush1.bf16.xpose.msra.mxu0 0
        %422 = vmatprep.subr.bf16.mxu0 0
        %423 = vmatpush1.bf16.xpose.msra.mxu0 0
        %424 = vmatprep.subr.bf16.mxu0 0
        %425 = vmatpush1.bf16.xpose.msra.mxu0 0
        %426 = vmatprep.subr.bf16.mxu0 0
        %427 = vmatpush1.bf16.xpose.msra.mxu0 0
        %428 = vmatprep.subr.bf16.mxu0 0
        %429 = vmatpush1.bf16.xpose.msra.mxu0 0
        %430 = vmatprep.subr.bf16.mxu0 0
        %431 = vmatpush1.bf16.xpose.msra.mxu0 0
        %432 = vmatprep.mubr.bf16.mxu0 0
        %433 = vmatmul.mubr.bf16.gmra.mrb[0].mxu0 %v395
        %v434 = vpop.f32.mrb[0].mxu0
        %v435 = vadd.f32 0.0, %v434
        %v436 = vpop.f32.mrb[0].mxu0
        %v437 = vpop.f32.mrb[0].mxu0
        %v438 = vpop.f32.mrb[0].mxu0
        %439 = vdwg.mxu0
        %v440 = vmul.f32 %v435, 0.35355338
        %v442 = vlaneseq
        %v443 = vshrl.u32 %v442, 7
        %v444 = vsub.s32 0, %v443
        %v445 = vrot.slane %v318, %v444
        %v447 = vadd.f32 %v440, %v445
        %v448 = vsel %vm393, %v447, -inf
        %449 = vmax.xlane.f32.xlu0 %v448
        %v450 = vpop.xlane.xlu0 %449
        %v451 = vsub.f32 %v447, %v450
        %v452 = vmul.f32 %v451, 1.442695
        %v453 = vpow.pop %v452
        %v454 = vsel %vm393, %v453, 0.0
        %455 = vadd.xlane.f32.xlu0 %v454
        %v456 = vpop.xlane.xlu0 %455
        %v457 = vrcp.pop %v456
        %v458 = vmul.f32 %v456, %v457
        %v459 = vsub.f32 2.0, %v458
        %v460 = vmul.f32 %v457, %v459
        %v461 = vmul.f32 %v453, %v460
        %v462 = vpack.c.bf16 %v461, %v461
        %463 = vrot.lane.b32.xlu0 %v389, 64
        %v464 = vpop.permute.xlu0 %463
        %v466 = vsel %vm393, %v462, 0
        %vm468 = vcmask 1043456
        %v470 = vsel %vm468, %v464, 0
        %472 = vmatprep.subr.bf16.mxu0 0
        %473 = vmatpush1.bf16.msra.mxu0 %v470
        %474 = vmatprep.subr.bf16.mxu0 0
        %475 = vmatpush1.bf16.msra.mxu0 0
        %476 = vmatprep.subr.bf16.mxu0 0
        %477 = vmatpush1.bf16.msra.mxu0 0
        %478 = vmatprep.subr.bf16.mxu0 0
        %479 = vmatpush1.bf16.msra.mxu0 0
        %480 = vmatprep.subr.bf16.mxu0 0
        %481 = vmatpush1.bf16.msra.mxu0 0
        %482 = vmatprep.subr.bf16.mxu0 0
        %483 = vmatpush1.bf16.msra.mxu0 0
        %484 = vmatprep.subr.bf16.mxu0 0
        %485 = vmatpush1.bf16.msra.mxu0 0
        %486 = vmatprep.subr.bf16.mxu0 0
        %487 = vmatpush1.bf16.msra.mxu0 0
        %488 = vmatprep.subr.bf16.mxu0 0
        %489 = vmatpush1.bf16.msra.mxu0 0
        %490 = vmatprep.subr.bf16.mxu0 0
        %491 = vmatpush1.bf16.msra.mxu0 0
        %492 = vmatprep.subr.bf16.mxu0 0
        %493 = vmatpush1.bf16.msra.mxu0 0
        %494 = vmatprep.subr.bf16.mxu0 0
        %495 = vmatpush1.bf16.msra.mxu0 0
        %496 = vmatprep.subr.bf16.mxu0 0
        %497 = vmatpush1.bf16.msra.mxu0 0
        %498 = vmatprep.subr.bf16.mxu0 0
        %499 = vmatpush1.bf16.msra.mxu0 0
        %500 = vmatprep.subr.bf16.mxu0 0
        %501 = vmatpush1.bf16.msra.mxu0 0
        %502 = vmatprep.subr.bf16.mxu0 0
        %503 = vmatpush1.bf16.msra.mxu0 0
        %504 = vmatprep.mubr.bf16.mxu0 0
        %505 = vmatmul.mubr.bf16.gmra.mrb[0].mxu0 %v466
        %v506 = vpop.f32.mrb[0].mxu0
        %v507 = vadd.f32 0.0, %v506
        %v508 = vpop.f32.mrb[0].mxu0
        %v509 = vpop.f32.mrb[0].mxu0
        %v510 = vpop.f32.mrb[0].mxu0
        %511 = vdwg.mxu0
        %v512 = vpack.c.bf16 %v507, %v507
        %513 = vrot.lane.b32.xlu0 %v389, 120
        %v514 = vpop.permute.xlu0 %513
        %515 = vrot.lane.b32.xlu0 %v389, 88
        %v516 = vpop.permute.xlu0 %515
        %v518 = vsel %vm393, %v514, 0
        %v521 = vsel %vm393, %v516, 0
        %523 = vmatprep.subr.bf16.mxu0 0
        %524 = vmatpush1.bf16.xpose.msra.mxu0 %v521
        %525 = vmatprep.subr.bf16.mxu0 0
        %526 = vmatpush1.bf16.xpose.msra.mxu0 0
        %527 = vmatprep.subr.bf16.mxu0 0
        %528 = vmatpush1.bf16.xpose.msra.mxu0 0
        %529 = vmatprep.subr.bf16.mxu0 0
        %530 = vmatpush1.bf16.xpose.msra.mxu0 0
        %531 = vmatprep.subr.bf16.mxu0 0
        %532 = vmatpush1.bf16.xpose.msra.mxu0 0
        %533 = vmatprep.subr.bf16.mxu0 0
        %534 = vmatpush1.bf16.xpose.msra.mxu0 0
        %535 = vmatprep.subr.bf16.mxu0 0
        %536 = vmatpush1.bf16.xpose.msra.mxu0 0
        %537 = vmatprep.subr.bf16.mxu0 0
        %538 = vmatpush1.bf16.xpose.msra.mxu0 0
        %539 = vmatprep.subr.bf16.mxu0 0
        %540 = vmatpush1.bf16.xpose.msra.mxu0 0
        %541 = vmatprep.subr.bf16.mxu0 0
        %542 = vmatpush1.bf16.xpose.msra.mxu0 0
        %543 = vmatprep.subr.bf16.mxu0 0
        %544 = vmatpush1.bf16.xpose.msra.mxu0 0
        %545 = vmatprep.subr.bf16.mxu0 0
        %546 = vmatpush1.bf16.xpose.msra.mxu0 0
        %547 = vmatprep.subr.bf16.mxu0 0
        %548 = vmatpush1.bf16.xpose.msra.mxu0 0
        %549 = vmatprep.subr.bf16.mxu0 0
        %550 = vmatpush1.bf16.xpose.msra.mxu0 0
        %551 = vmatprep.subr.bf16.mxu0 0
        %552 = vmatpush1.bf16.xpose.msra.mxu0 0
        %553 = vmatprep.subr.bf16.mxu0 0
        %554 = vmatpush1.bf16.xpose.msra.mxu0 0
        %555 = vmatprep.mubr.bf16.mxu0 0
        %556 = vmatmul.mubr.bf16.gmra.mrb[0].mxu0 %v518
        %v557 = vpop.f32.mrb[0].mxu0
        %v558 = vadd.f32 0.0, %v557
        %v559 = vpop.f32.mrb[0].mxu0
        %v560 = vpop.f32.mrb[0].mxu0
        %v561 = vpop.f32.mrb[0].mxu0
        %562 = vdwg.mxu0
        %v563 = vmul.f32 %v558, 0.35355338
        %v564 = vadd.f32 %v563, %v445
        %v565 = vsel %vm393, %v564, -inf
        %566 = vmax.xlane.f32.xlu0 %v565
        %v567 = vpop.xlane.xlu0 %566
        %v568 = vsub.f32 %v564, %v567
        %v569 = vmul.f32 %v568, 1.442695
        %v570 = vpow.pop %v569
        %v571 = vsel %vm393, %v570, 0.0
        %572 = vadd.xlane.f32.xlu0 %v571
        %v573 = vpop.xlane.xlu0 %572
        %v574 = vrcp.pop %v573
        %v575 = vmul.f32 %v573, %v574
        %v576 = vsub.f32 2.0, %v575
        %v577 = vmul.f32 %v574, %v576
        %v578 = vmul.f32 %v570, %v577
        %v579 = vpack.c.bf16 %v578, %v578
        %580 = vrot.lane.b32.xlu0 %v389, 56
        %v581 = vpop.permute.xlu0 %580
        %v583 = vsel %vm393, %v579, 0
        %v586 = vsel %vm468, %v581, 0
        %588 = vmatprep.subr.bf16.mxu0 0
        %589 = vmatpush1.bf16.msra.mxu0 %v586
        %590 = vmatprep.subr.bf16.mxu0 0
        %591 = vmatpush1.bf16.msra.mxu0 0
        %592 = vmatprep.subr.bf16.mxu0 0
        %593 = vmatpush1.bf16.msra.mxu0 0
        %594 = vmatprep.subr.bf16.mxu0 0
        %595 = vmatpush1.bf16.msra.mxu0 0
        %596 = vmatprep.subr.bf16.mxu0 0
        %597 = vmatpush1.bf16.msra.mxu0 0
        %598 = vmatprep.subr.bf16.mxu0 0
        %599 = vmatpush1.bf16.msra.mxu0 0
        %600 = vmatprep.subr.bf16.mxu0 0
        %601 = vmatpush1.bf16.msra.mxu0 0
        %602 = vmatprep.subr.bf16.mxu0 0
        %603 = vmatpush1.bf16.msra.mxu0 0
        %604 = vmatprep.subr.bf16.mxu0 0
        %605 = vmatpush1.bf16.msra.mxu0 0
        %606 = vmatprep.subr.bf16.mxu0 0
        %607 = vmatpush1.bf16.msra.mxu0 0
        %608 = vmatprep.subr.bf16.mxu0 0
        %609 = vmatpush1.bf16.msra.mxu0 0
        %610 = vmatprep.subr.bf16.mxu0 0
        %611 = vmatpush1.bf16.msra.mxu0 0
        %612 = vmatprep.subr.bf16.mxu0 0
        %613 = vmatpush1.bf16.msra.mxu0 0
        %614 = vmatprep.subr.bf16.mxu0 0
        %615 = vmatpush1.bf16.msra.mxu0 0
        %616 = vmatprep.subr.bf16.mxu0 0
        %617 = vmatpush1.bf16.msra.mxu0 0
        %618 = vmatprep.subr.bf16.mxu0 0
        %619 = vmatpush1.bf16.msra.mxu0 0
        %620 = vmatprep.mubr.bf16.mxu0 0
        %621 = vmatmul.mubr.bf16.gmra.mrb[0].mxu0 %v583
        %v622 = vpop.f32.mrb[0].mxu0
        %v623 = vadd.f32 0.0, %v622
        %v624 = vpop.f32.mrb[0].mxu0
        %v625 = vpop.f32.mrb[0].mxu0
        %v626 = vpop.f32.mrb[0].mxu0
        %627 = vdwg.mxu0
        %v628 = vpack.c.bf16 %v623, %v623
        %v630 = vsel %vm393, %v628, 0
        %v633 = vsel %vm468, %v386, 0
        %635 = vmatprep.subr.bf16.mxu0 0
        %636 = vmatpush1.bf16.msra.mxu0 %v633
        %637 = vmatprep.subr.bf16.mxu0 0
        %638 = vmatpush1.bf16.msra.mxu0 0
        %639 = vmatprep.subr.bf16.mxu0 0
        %640 = vmatpush1.bf16.msra.mxu0 0
        %641 = vmatprep.subr.bf16.mxu0 0
        %642 = vmatpush1.bf16.msra.mxu0 0
        %643 = vmatprep.subr.bf16.mxu0 0
        %644 = vmatpush1.bf16.msra.mxu0 0
        %645 = vmatprep.subr.bf16.mxu0 0
        %646 = vmatpush1.bf16.msra.mxu0 0
        %647 = vmatprep.subr.bf16.mxu0 0
        %648 = vmatpush1.bf16.msra.mxu0 0
        %649 = vmatprep.subr.bf16.mxu0 0
        %650 = vmatpush1.bf16.msra.mxu0 0
        %651 = vmatprep.subr.bf16.mxu0 0
        %652 = vmatpush1.bf16.msra.mxu0 0
        %653 = vmatprep.subr.bf16.mxu0 0
        %654 = vmatpush1.bf16.msra.mxu0 0
        %655 = vmatprep.subr.bf16.mxu0 0
        %656 = vmatpush1.bf16.msra.mxu0 0
        %657 = vmatprep.subr.bf16.mxu0 0
        %658 = vmatpush1.bf16.msra.mxu0 0
        %659 = vmatprep.subr.bf16.mxu0 0
        %660 = vmatpush1.bf16.msra.mxu0 0
        %661 = vmatprep.subr.bf16.mxu0 0
        %662 = vmatpush1.bf16.msra.mxu0 0
        %663 = vmatprep.subr.bf16.mxu0 0
        %664 = vmatpush1.bf16.msra.mxu0 0
        %665 = vmatprep.subr.bf16.mxu0 0
        %666 = vmatpush1.bf16.msra.mxu0 0
        %667 = vmatprep.mubr.bf16.mxu0 0
        %668 = vmatmul.mubr.bf16.gmra.mrb[0].mxu0 %v630
        %v669 = vpop.f32.mrb[0].mxu0
        %v670 = vadd.f32 0.0, %v669
        %v671 = vpop.f32.mrb[0].mxu0
        %v672 = vpop.f32.mrb[0].mxu0
        %v673 = vpop.f32.mrb[0].mxu0
        %674 = vdwg.mxu0
        %v676 = vsel %vm393, %v512, 0
        %v679 = vsel %vm468, %v385, 0
        %681 = vmatprep.subr.bf16.mxu0 0
        %682 = vmatpush1.bf16.msra.mxu0 %v679
        %683 = vmatprep.subr.bf16.mxu0 0
        %684 = vmatpush1.bf16.msra.mxu0 0
        %685 = vmatprep.subr.bf16.mxu0 0
        %686 = vmatpush1.bf16.msra.mxu0 0
        %687 = vmatprep.subr.bf16.mxu0 0
        %688 = vmatpush1.bf16.msra.mxu0 0
        %689 = vmatprep.subr.bf16.mxu0 0
        %690 = vmatpush1.bf16.msra.mxu0 0
        %691 = vmatprep.subr.bf16.mxu0 0
        %692 = vmatpush1.bf16.msra.mxu0 0
        %693 = vmatprep.subr.bf16.mxu0 0
        %694 = vmatpush1.bf16.msra.mxu0 0
        %695 = vmatprep.subr.bf16.mxu0 0
        %696 = vmatpush1.bf16.msra.mxu0 0
        %697 = vmatprep.subr.bf16.mxu0 0
        %698 = vmatpush1.bf16.msra.mxu0 0
        %699 = vmatprep.subr.bf16.mxu0 0
        %700 = vmatpush1.bf16.msra.mxu0 0
        %701 = vmatprep.subr.bf16.mxu0 0
        %702 = vmatpush1.bf16.msra.mxu0 0
        %703 = vmatprep.subr.bf16.mxu0 0
        %704 = vmatpush1.bf16.msra.mxu0 0
        %705 = vmatprep.subr.bf16.mxu0 0
        %706 = vmatpush1.bf16.msra.mxu0 0
        %707 = vmatprep.subr.bf16.mxu0 0
        %708 = vmatpush1.bf16.msra.mxu0 0
        %709 = vmatprep.subr.bf16.mxu0 0
        %710 = vmatpush1.bf16.msra.mxu0 0
        %711 = vmatprep.subr.bf16.mxu0 0
        %712 = vmatpush1.bf16.msra.mxu0 0
        %713 = vmatprep.mubr.bf16.mxu0 0
        %714 = vmatmul.mubr.bf16.gmra.mrb[0].mxu0 %v676
        %v715 = vpop.f32.mrb[0].mxu0
        %v716 = vadd.f32 %v670, %v715
        %v717 = vpop.f32.mrb[0].mxu0
        %v718 = vpop.f32.mrb[0].mxu0
        %v719 = vpop.f32.mrb[0].mxu0
        %720 = vdwg.mxu0
        %721 = vrot.lane.b32.xlu0 %v389, 112
        %v722 = vpop.permute.xlu0 %721
        %723 = vrot.lane.b32.xlu0 %v389, 80
        %v724 = vpop.permute.xlu0 %723
        %v726 = vsel %vm393, %v722, 0
        %v729 = vsel %vm393, %v724, 0
        %731 = vmatprep.subr.bf16.mxu0 0
        %732 = vmatpush1.bf16.xpose.msra.mxu0 %v729
        %733 = vmatprep.subr.bf16.mxu0 0
        %734 = vmatpush1.bf16.xpose.msra.mxu0 0
        %735 = vmatprep.subr.bf16.mxu0 0
        %736 = vmatpush1.bf16.xpose.msra.mxu0 0
        %737 = vmatprep.subr.bf16.mxu0 0
        %738 = vmatpush1.bf16.xpose.msra.mxu0 0
        %739 = vmatprep.subr.bf16.mxu0 0
        %740 = vmatpush1.bf16.xpose.msra.mxu0 0
        %741 = vmatprep.subr.bf16.mxu0 0
        %742 = vmatpush1.bf16.xpose.msra.mxu0 0
        %743 = vmatprep.subr.bf16.mxu0 0
        %744 = vmatpush1.bf16.xpose.msra.mxu0 0
        %745 = vmatprep.subr.bf16.mxu0 0
        %746 = vmatpush1.bf16.xpose.msra.mxu0 0
        %747 = vmatprep.subr.bf16.mxu0 0
        %748 = vmatpush1.bf16.xpose.msra.mxu0 0
        %749 = vmatprep.subr.bf16.mxu0 0
        %750 = vmatpush1.bf16.xpose.msra.mxu0 0
        %751 = vmatprep.subr.bf16.mxu0 0
        %752 = vmatpush1.bf16.xpose.msra.mxu0 0
        %753 = vmatprep.subr.bf16.mxu0 0
        %754 = vmatpush1.bf16.xpose.msra.mxu0 0
        %755 = vmatprep.subr.bf16.mxu0 0
        %756 = vmatpush1.bf16.xpose.msra.mxu0 0
        %757 = vmatprep.subr.bf16.mxu0 0
        %758 = vmatpush1.bf16.xpose.msra.mxu0 0
        %759 = vmatprep.subr.bf16.mxu0 0
        %760 = vmatpush1.bf16.xpose.msra.mxu0 0
        %761 = vmatprep.subr.bf16.mxu0 0
        %762 = vmatpush1.bf16.xpose.msra.mxu0 0
        %763 = vmatprep.mubr.bf16.mxu0 0
        %764 = vmatmul.mubr.bf16.gmra.mrb[0].mxu0 %v726
        %v765 = vpop.f32.mrb[0].mxu0
        %v766 = vadd.f32 0.0, %v765
        %v767 = vpop.f32.mrb[0].mxu0
        %v768 = vpop.f32.mrb[0].mxu0
        %v769 = vpop.f32.mrb[0].mxu0
        %770 = vdwg.mxu0
        %v771 = vmul.f32 %v766, 0.35355338
        %v772 = vadd.f32 %v771, %v445
        %v773 = vsel %vm393, %v772, -inf
        %774 = vmax.xlane.f32.xlu0 %v773
        %v775 = vpop.xlane.xlu0 %774
        %v776 = vsub.f32 %v772, %v775
        %v777 = vmul.f32 %v776, 1.442695
        %v778 = vpow.pop %v777
        %v779 = vsel %vm393, %v778, 0.0
        %780 = vadd.xlane.f32.xlu0 %v779
        %v781 = vpop.xlane.xlu0 %780
        %v782 = vrcp.pop %v781
        %v783 = vmul.f32 %v781, %v782
        %v784 = vsub.f32 2.0, %v783
        %v785 = vmul.f32 %v782, %v784
        %v786 = vmul.f32 %v778, %v785
        %v787 = vpack.c.bf16 %v786, %v786
        %788 = vrot.lane.b32.xlu0 %v389, 48
        %v789 = vpop.permute.xlu0 %788
        %v791 = vsel %vm393, %v787, 0
        %v794 = vsel %vm468, %v789, 0
        %796 = vmatprep.subr.bf16.mxu0 0
        %797 = vmatpush1.bf16.msra.mxu0 %v794
        %798 = vmatprep.subr.bf16.mxu0 0
        %799 = vmatpush1.bf16.msra.mxu0 0
        %800 = vmatprep.subr.bf16.mxu0 0
        %801 = vmatpush1.bf16.msra.mxu0 0
        %802 = vmatprep.subr.bf16.mxu0 0
        %803 = vmatpush1.bf16.msra.mxu0 0
        %804 = vmatprep.subr.bf16.mxu0 0
        %805 = vmatpush1.bf16.msra.mxu0 0
        %806 = vmatprep.subr.bf16.mxu0 0
        %807 = vmatpush1.bf16.msra.mxu0 0
        %808 = vmatprep.subr.bf16.mxu0 0
        %809 = vmatpush1.bf16.msra.mxu0 0
        %810 = vmatprep.subr.bf16.mxu0 0
        %811 = vmatpush1.bf16.msra.mxu0 0
        %812 = vmatprep.subr.bf16.mxu0 0
        %813 = vmatpush1.bf16.msra.mxu0 0
        %814 = vmatprep.subr.bf16.mxu0 0
        %815 = vmatpush1.bf16.msra.mxu0 0
        %816 = vmatprep.subr.bf16.mxu0 0
        %817 = vmatpush1.bf16.msra.mxu0 0
        %818 = vmatprep.subr.bf16.mxu0 0
        %819 = vmatpush1.bf16.msra.mxu0 0
        %820 = vmatprep.subr.bf16.mxu0 0
        %821 = vmatpush1.bf16.msra.mxu0 0
        %822 = vmatprep.subr.bf16.mxu0 0
        %823 = vmatpush1.bf16.msra.mxu0 0
        %824 = vmatprep.subr.bf16.mxu0 0
        %825 = vmatpush1.bf16.msra.mxu0 0
        %826 = vmatprep.subr.bf16.mxu0 0
        %827 = vmatpush1.bf16.msra.mxu0 0
        %828 = vmatprep.mubr.bf16.mxu0 0
        %829 = vmatmul.mubr.bf16.gmra.mrb[0].mxu0 %v791
        %v830 = vpop.f32.mrb[0].mxu0
        %v831 = vadd.f32 0.0, %v830
        %v832 = vpop.f32.mrb[0].mxu0
        %v833 = vpop.f32.mrb[0].mxu0
        %v834 = vpop.f32.mrb[0].mxu0
        %835 = vdwg.mxu0
        %v836 = vpack.c.bf16 %v831, %v831
        %v838 = vsel %vm393, %v836, 0
        %v841 = vsel %vm468, %v387, 0
        %843 = vmatprep.subr.bf16.mxu0 0
        %844 = vmatpush1.bf16.msra.mxu0 %v841
        %845 = vmatprep.subr.bf16.mxu0 0
        %846 = vmatpush1.bf16.msra.mxu0 0
        %847 = vmatprep.subr.bf16.mxu0 0
        %848 = vmatpush1.bf16.msra.mxu0 0
        %849 = vmatprep.subr.bf16.mxu0 0
        %850 = vmatpush1.bf16.msra.mxu0 0
        %851 = vmatprep.subr.bf16.mxu0 0
        %852 = vmatpush1.bf16.msra.mxu0 0
        %853 = vmatprep.subr.bf16.mxu0 0
        %854 = vmatpush1.bf16.msra.mxu0 0
        %855 = vmatprep.subr.bf16.mxu0 0
        %856 = vmatpush1.bf16.msra.mxu0 0
        %857 = vmatprep.subr.bf16.mxu0 0
        %858 = vmatpush1.bf16.msra.mxu0 0
        %859 = vmatprep.subr.bf16.mxu0 0
        %860 = vmatpush1.bf16.msra.mxu0 0
        %861 = vmatprep.subr.bf16.mxu0 0
        %862 = vmatpush1.bf16.msra.mxu0 0
        %863 = vmatprep.subr.bf16.mxu0 0
        %864 = vmatpush1.bf16.msra.mxu0 0
        %865 = vmatprep.subr.bf16.mxu0 0
        %866 = vmatpush1.bf16.msra.mxu0 0
        %867 = vmatprep.subr.bf16.mxu0 0
        %868 = vmatpush1.bf16.msra.mxu0 0
        %869 = vmatprep.subr.bf16.mxu0 0
        %870 = vmatpush1.bf16.msra.mxu0 0
        %871 = vmatprep.subr.bf16.mxu0 0
        %872 = vmatpush1.bf16.msra.mxu0 0
        %873 = vmatprep.subr.bf16.mxu0 0
        %874 = vmatpush1.bf16.msra.mxu0 0
        %875 = vmatprep.mubr.bf16.mxu0 0
        %876 = vmatmul.mubr.bf16.gmra.mrb[0].mxu0 %v838
        %v877 = vpop.f32.mrb[0].mxu0
        %v878 = vadd.f32 0.0, %v877
        %v879 = vpop.f32.mrb[0].mxu0
        %v880 = vpop.f32.mrb[0].mxu0
        %v881 = vpop.f32.mrb[0].mxu0
        %882 = vdwg.mxu0
        %v883 = vadd.f32 %v716, %v878
        %884 = vrot.lane.b32.xlu0 %v389, 104
        %v885 = vpop.permute.xlu0 %884
        %886 = vrot.lane.b32.xlu0 %v389, 72
        %v887 = vpop.permute.xlu0 %886
        %v889 = vsel %vm393, %v885, 0
        %v892 = vsel %vm393, %v887, 0
        %894 = vmatprep.subr.bf16.mxu0 0
        %895 = vmatpush1.bf16.xpose.msra.mxu0 %v892
        %896 = vmatprep.subr.bf16.mxu0 0
        %897 = vmatpush1.bf16.xpose.msra.mxu0 0
        %898 = vmatprep.subr.bf16.mxu0 0
        %899 = vmatpush1.bf16.xpose.msra.mxu0 0
        %900 = vmatprep.subr.bf16.mxu0 0
        %901 = vmatpush1.bf16.xpose.msra.mxu0 0
        %902 = vmatprep.subr.bf16.mxu0 0
        %903 = vmatpush1.bf16.xpose.msra.mxu0 0
        %904 = vmatprep.subr.bf16.mxu0 0
        %905 = vmatpush1.bf16.xpose.msra.mxu0 0
        %906 = vmatprep.subr.bf16.mxu0 0
        %907 = vmatpush1.bf16.xpose.msra.mxu0 0
        %908 = vmatprep.subr.bf16.mxu0 0
        %909 = vmatpush1.bf16.xpose.msra.mxu0 0
        %910 = vmatprep.subr.bf16.mxu0 0
        %911 = vmatpush1.bf16.xpose.msra.mxu0 0
        %912 = vmatprep.subr.bf16.mxu0 0
        %913 = vmatpush1.bf16.xpose.msra.mxu0 0
        %914 = vmatprep.subr.bf16.mxu0 0
        %915 = vmatpush1.bf16.xpose.msra.mxu0 0
        %916 = vmatprep.subr.bf16.mxu0 0
        %917 = vmatpush1.bf16.xpose.msra.mxu0 0
        %918 = vmatprep.subr.bf16.mxu0 0
        %919 = vmatpush1.bf16.xpose.msra.mxu0 0
        %920 = vmatprep.subr.bf16.mxu0 0
        %921 = vmatpush1.bf16.xpose.msra.mxu0 0
        %922 = vmatprep.subr.bf16.mxu0 0
        %923 = vmatpush1.bf16.xpose.msra.mxu0 0
        %924 = vmatprep.subr.bf16.mxu0 0
        %925 = vmatpush1.bf16.xpose.msra.mxu0 0
        %926 = vmatprep.mubr.bf16.mxu0 0
        %927 = vmatmul.mubr.bf16.gmra.mrb[0].mxu0 %v889
        %v928 = vpop.f32.mrb[0].mxu0
        %v929 = vadd.f32 0.0, %v928
        %v930 = vpop.f32.mrb[0].mxu0
        %v931 = vpop.f32.mrb[0].mxu0
        %v932 = vpop.f32.mrb[0].mxu0
        %933 = vdwg.mxu0
        %v934 = vmul.f32 %v929, 0.35355338
        %v935 = vadd.f32 %v934, %v445
        %v936 = vsel %vm393, %v935, -inf
        %937 = vmax.xlane.f32.xlu0 %v936
        %v938 = vpop.xlane.xlu0 %937
        %v939 = vsub.f32 %v935, %v938
        %v940 = vmul.f32 %v939, 1.442695
        %v941 = vpow.pop %v940
        %v942 = vsel %vm393, %v941, 0.0
        %943 = vadd.xlane.f32.xlu0 %v942
        %v944 = vpop.xlane.xlu0 %943
        %v945 = vrcp.pop %v944
        %v946 = vmul.f32 %v944, %v945
        %v947 = vsub.f32 2.0, %v946
        %v948 = vmul.f32 %v945, %v947
        %v949 = vmul.f32 %v941, %v948
        %v950 = vpack.c.bf16 %v949, %v949
        %951 = vrot.lane.b32.xlu0 %v389, 40
        %v952 = vpop.permute.xlu0 %951
        %v954 = vsel %vm393, %v950, 0
        %v957 = vsel %vm468, %v952, 0
        %959 = vmatprep.subr.bf16.mxu0 0
        %960 = vmatpush1.bf16.msra.mxu0 %v957
        %961 = vmatprep.subr.bf16.mxu0 0
        %962 = vmatpush1.bf16.msra.mxu0 0
        %963 = vmatprep.subr.bf16.mxu0 0
        %964 = vmatpush1.bf16.msra.mxu0 0
        %965 = vmatprep.subr.bf16.mxu0 0
        %966 = vmatpush1.bf16.msra.mxu0 0
        %967 = vmatprep.subr.bf16.mxu0 0
        %968 = vmatpush1.bf16.msra.mxu0 0
        %969 = vmatprep.subr.bf16.mxu0 0
        %970 = vmatpush1.bf16.msra.mxu0 0
        %971 = vmatprep.subr.bf16.mxu0 0
        %972 = vmatpush1.bf16.msra.mxu0 0
        %973 = vmatprep.subr.bf16.mxu0 0
        %974 = vmatpush1.bf16.msra.mxu0 0
        %975 = vmatprep.subr.bf16.mxu0 0
        %976 = vmatpush1.bf16.msra.mxu0 0
        %977 = vmatprep.subr.bf16.mxu0 0
        %978 = vmatpush1.bf16.msra.mxu0 0
        %979 = vmatprep.subr.bf16.mxu0 0
        %980 = vmatpush1.bf16.msra.mxu0 0
        %981 = vmatprep.subr.bf16.mxu0 0
        %982 = vmatpush1.bf16.msra.mxu0 0
        %983 = vmatprep.subr.bf16.mxu0 0
        %984 = vmatpush1.bf16.msra.mxu0 0
        %985 = vmatprep.subr.bf16.mxu0 0
        %986 = vmatpush1.bf16.msra.mxu0 0
        %987 = vmatprep.subr.bf16.mxu0 0
        %988 = vmatpush1.bf16.msra.mxu0 0
        %989 = vmatprep.subr.bf16.mxu0 0
        %990 = vmatpush1.bf16.msra.mxu0 0
        %991 = vmatprep.mubr.bf16.mxu0 0
        %992 = vmatmul.mubr.bf16.gmra.mrb[0].mxu0 %v954
        %v993 = vpop.f32.mrb[0].mxu0
        %v994 = vadd.f32 0.0, %v993
        %v995 = vpop.f32.mrb[0].mxu0
        %v996 = vpop.f32.mrb[0].mxu0
        %v997 = vpop.f32.mrb[0].mxu0
        %998 = vdwg.mxu0
        %v999 = vpack.c.bf16 %v994, %v994
        %v1001 = vsel %vm393, %v999, 0
        %v1004 = vsel %vm468, %v388, 0
        %1006 = vmatprep.subr.bf16.mxu0 0
        %1007 = vmatpush1.bf16.msra.mxu0 %v1004
        %1008 = vmatprep.subr.bf16.mxu0 0
        %1009 = vmatpush1.bf16.msra.mxu0 0
        %1010 = vmatprep.subr.bf16.mxu0 0
        %1011 = vmatpush1.bf16.msra.mxu0 0
        %1012 = vmatprep.subr.bf16.mxu0 0
        %1013 = vmatpush1.bf16.msra.mxu0 0
        %1014 = vmatprep.subr.bf16.mxu0 0
        %1015 = vmatpush1.bf16.msra.mxu0 0
        %1016 = vmatprep.subr.bf16.mxu0 0
        %1017 = vmatpush1.bf16.msra.mxu0 0
        %1018 = vmatprep.subr.bf16.mxu0 0
        %1019 = vmatpush1.bf16.msra.mxu0 0
        %1020 = vmatprep.subr.bf16.mxu0 0
        %1021 = vmatpush1.bf16.msra.mxu0 0
        %1022 = vmatprep.subr.bf16.mxu0 0
        %1023 = vmatpush1.bf16.msra.mxu0 0
        %1024 = vmatprep.subr.bf16.mxu0 0
        %1025 = vmatpush1.bf16.msra.mxu0 0
        %1026 = vmatprep.subr.bf16.mxu0 0
        %1027 = vmatpush1.bf16.msra.mxu0 0
        %1028 = vmatprep.subr.bf16.mxu0 0
        %1029 = vmatpush1.bf16.msra.mxu0 0
        %1030 = vmatprep.subr.bf16.mxu0 0
        %1031 = vmatpush1.bf16.msra.mxu0 0
        %1032 = vmatprep.subr.bf16.mxu0 0
        %1033 = vmatpush1.bf16.msra.mxu0 0
        %1034 = vmatprep.subr.bf16.mxu0 0
        %1035 = vmatpush1.bf16.msra.mxu0 0
        %1036 = vmatprep.subr.bf16.mxu0 0
        %1037 = vmatpush1.bf16.msra.mxu0 0
        %1038 = vmatprep.mubr.bf16.mxu0 0
        %1039 = vmatmul.mubr.bf16.gmra.mrb[0].mxu0 %v1001
        %v1040 = vpop.f32.mrb[0].mxu0
        %v1041 = vadd.f32 0.0, %v1040
        %v1042 = vpop.f32.mrb[0].mxu0
        %v1043 = vpop.f32.mrb[0].mxu0
        %v1044 = vpop.f32.mrb[0].mxu0
        %1045 = vdwg.mxu0
        %v1046 = vadd.f32 %v883, %v1041
        %v1047 = vlaneseq
        %v1048 = vshrl.u32 %v1047, 7
        %v1049 = vsub.s32 2, %v1048
        %v1050 = vrot.slane %v319, %v1049
        %v1051 = vadd.f32 %v1046, %v1050
        %v1052 = vadd.f32 %v1051, %v317
        %v1053 = vsel %vm341, %v1052, 0.0
        %1054 = vadd.xlane.f32.xlu0 %v1053
        %v1055 = vpop.xlane.xlu0 %1054
        %v1056 = vrcp.pop 32.0
        %v1057 = vmul.f32 %v1055, %v1056
        %v1058 = vsub.f32 %v1052, %v1057
        %v1059 = vmul.f32 %v1058, %v1058
        %v1060 = vsel %vm341, %v1059, 0.0
        %1061 = vadd.xlane.f32.xlu0 %v1060
        %v1062 = vpop.xlane.xlu0 %1061
        %v1063 = vmul.f32 %v1062, %v1056
        %v1064 = vadd.f32 %v1063, 1e-12
        %v1065 = vrsqrt.pop %v1064
        %v1066 = vmul.f32 %v1058, %v1065
        %v1067 = vlaneseq
        %v1068 = vshrl.u32 %v1067, 7
        %v1069 = vsub.s32 3, %v1068
        %v1070 = vrot.slane %v319, %v1069
        %v1071 = vmul.f32 %v1066, %v1070
        %v1072 = vlaneseq
        %v1073 = vshrl.u32 %v1072, 7
        %v1074 = vsub.s32 4, %v1073
        %v1075 = vrot.slane %v319, %v1074
        %v1076 = vadd.f32 %v1071, %v1075
        %v1077 = vpack.c.bf16 %v1076, %v1076
        %v1078 = vld [vmem:[#allocation2] sm:$0xf]
        %v1079 = vld [vmem:[#allocation2 + $0x4] sm:$0xf]
        %v1080 = vld [vmem:[#allocation2 + $0x8] sm:$0xf]
        %v1081 = vld [vmem:[#allocation2 + $0xc] sm:$0xf]
        %v1082 = vlaneseq
        %v1083 = vshrl.u32 %v1082, 7
        %v1084 = vsub.s32 1, %v1083
        %v1085 = vrot.slane %v319, %v1084
        %v1090 = vunpack.c.l.b16 %v1078
        %v1091 = vunpack.c.l.b16 %v1079
        %v1092 = vunpack.c.l.b16 %v1080
        %v1093 = vunpack.c.l.b16 %v1081
        %v1094 = vpack.c.b16 %v1091, %v1090
        %v1095 = vpack.c.b16 %v1093, %v1092
        %v1099 = vsel %vm341, %v1077, 0
        %1101 = vmatprep.subr.bf16.mxu0 0
        %1102 = vmatpush1.bf16.msra.mxu0 %v1094
        %1103 = vmatprep.subr.bf16.mxu0 0
        %1104 = vmatpush1.bf16.msra.mxu0 %v1095
        %1105 = vmatprep.subr.bf16.mxu0 0
        %1106 = vmatpush1.bf16.msra.mxu0 0
        %1107 = vmatprep.subr.bf16.mxu0 0
        %1108 = vmatpush1.bf16.msra.mxu0 0
        %1109 = vmatprep.subr.bf16.mxu0 0
        %1110 = vmatpush1.bf16.msra.mxu0 0
        %1111 = vmatprep.subr.bf16.mxu0 0
        %1112 = vmatpush1.bf16.msra.mxu0 0
        %1113 = vmatprep.subr.bf16.mxu0 0
        %1114 = vmatpush1.bf16.msra.mxu0 0
        %1115 = vmatprep.subr.bf16.mxu0 0
        %1116 = vmatpush1.bf16.msra.mxu0 0
        %1117 = vmatprep.subr.bf16.mxu0 0
        %1118 = vmatpush1.bf16.msra.mxu0 0
        %1119 = vmatprep.subr.bf16.mxu0 0
        %1120 = vmatpush1.bf16.msra.mxu0 0
        %1121 = vmatprep.subr.bf16.mxu0 0
        %1122 = vmatpush1.bf16.msra.mxu0 0
        %1123 = vmatprep.subr.bf16.mxu0 0
        %1124 = vmatpush1.bf16.msra.mxu0 0
        %1125 = vmatprep.subr.bf16.mxu0 0
        %1126 = vmatpush1.bf16.msra.mxu0 0
        %1127 = vmatprep.subr.bf16.mxu0 0
        %1128 = vmatpush1.bf16.msra.mxu0 0
        %1129 = vmatprep.subr.bf16.mxu0 0
        %1130 = vmatpush1.bf16.msra.mxu0 0
        %1131 = vmatprep.subr.bf16.mxu0 0
        %1132 = vmatpush1.bf16.msra.mxu0 0
        %1133 = vmatprep.mubr.bf16.mxu0 0
        %1134 = vmatmul.mubr.bf16.gmra.mrb[0].mxu0 %v1099
        %v1135 = vpop.f32.mrb[0].mxu0
        %v1136 = vadd.f32 %v1085, %v1135
        %v1137 = vpop.f32.mrb[0].mxu0
        %v1138 = vpop.f32.mrb[0].mxu0
        %v1139 = vpop.f32.mrb[0].mxu0
        %1140 = vdwg.mxu0
        %v1141 = vmul.f32 %v1136, 0.5
        %v1142 = vrcp.pop 1.4142135
        %v1143 = vmul.f32 %v1136, %v1142
        %vm1144 = vcmp.ge.f32.partialorder %v1143, 0.0
        %v1145 = vsel %vm1144, 1.0, -1.0
        %v1146 = vand.u32 2147483647, %v1143
        %v1147 = vmul.f32 %v1146, 0.3275911
        %v1148 = vadd.f32 %v1147, 1.0
        %v1149 = vrcp.pop %v1148
        %v1150 = vmul.f32 %v1148, %v1149
        %v1151 = vsub.f32 2.0, %v1150
        %v1152 = vmul.f32 %v1149, %v1151
        %v1153 = vmul.f32 %v1152, 1.0614054
        %v1154 = vadd.f32 %v1153, -1.4531521
        %v1155 = vmul.f32 %v1154, %v1152
        %v1156 = vadd.f32 %v1155, 1.4214138
        %v1157 = vmul.f32 %v1156, %v1152
        %v1158 = vadd.f32 %v1157, -0.28449672
        %v1159 = vmul.f32 %v1158, %v1152
        %v1160 = vadd.f32 %v1159, 0.2548296
        %v1161 = vmul.f32 %v1160, %v1152
        %v1162 = vsub.f32 0.0, %v1146
        %v1163 = vmul.f32 %v1162, %v1146
        %v1164 = vmul.f32 %v1163, 1.442695
        %v1165 = vpow.pop %v1164
        %v1166 = vmul.f32 %v1161, %v1165
        %v1167 = vsub.f32 1.0, %v1166
        %v1168 = vmul.f32 %v1145, %v1167
        %v1169 = vadd.f32 %v1168, 1.0
        %v1170 = vmul.f32 %v1141, %v1169
        %v1171 = vpack.c.bf16 %v1170, %v1170
        %v1172 = vld [vmem:[%s5] sm:$0xf]
        %v1173 = vld [vmem:[%s5 + $0x4] sm:$0xf]
        %v1174 = vld [vmem:[%s5 + $0x8] sm:$0xf]
        %v1175 = vld [vmem:[%s5 + $0xc] sm:$0xf]
        %v1176 = vld [vmem:[%s5 + $0x10] sm:$0xf]
        %v1177 = vld [vmem:[%s5 + $0x14] sm:$0xf]
        %v1178 = vld [vmem:[%s5 + $0x18] sm:$0xf]
        %v1179 = vld [vmem:[%s5 + $0x1c] sm:$0xf]
        %v1180 = vlaneseq
        %v1181 = vshrl.u32 %v1180, 7
        %v1182 = vsub.s32 5, %v1181
        %v1183 = vrot.slane %v319, %v1182
        %v1192 = vunpack.c.l.b16 %v1172
        %v1193 = vunpack.c.l.b16 %v1173
        %v1194 = vunpack.c.l.b16 %v1174
        %v1195 = vunpack.c.l.b16 %v1175
        %v1196 = vunpack.c.l.b16 %v1176
        %v1197 = vunpack.c.l.b16 %v1177
        %v1198 = vunpack.c.l.b16 %v1178
        %v1199 = vunpack.c.l.b16 %v1179
        %v1200 = vpack.c.b16 %v1193, %v1192
        %v1201 = vpack.c.b16 %v1195, %v1194
        %v1202 = vpack.c.b16 %v1197, %v1196
        %v1203 = vpack.c.b16 %v1199, %v1198
        %vm1208 = vcmask 523264
        %v1210 = vsel %vm1208, %v1171, 0
        %1212 = vmatprep.subr.bf16.mxu0 0
        %1213 = vmatpush1.bf16.msra.mxu0 %v1200
        %1214 = vmatprep.subr.bf16.mxu0 0
        %1215 = vmatpush1.bf16.msra.mxu0 %v1201
        %1216 = vmatprep.subr.bf16.mxu0 0
        %1217 = vmatpush1.bf16.msra.mxu0 %v1202
        %1218 = vmatprep.subr.bf16.mxu0 0
        %1219 = vmatpush1.bf16.msra.mxu0 %v1203
        %1220 = vmatprep.subr.bf16.mxu0 0
        %1221 = vmatpush1.bf16.msra.mxu0 0
        %1222 = vmatprep.subr.bf16.mxu0 0
        %1223 = vmatpush1.bf16.msra.mxu0 0
        %1224 = vmatprep.subr.bf16.mxu0 0
        %1225 = vmatpush1.bf16.msra.mxu0 0
        %1226 = vmatprep.subr.bf16.mxu0 0
        %1227 = vmatpush1.bf16.msra.mxu0 0
        %1228 = vmatprep.subr.bf16.mxu0 0
        %1229 = vmatpush1.bf16.msra.mxu0 0
        %1230 = vmatprep.subr.bf16.mxu0 0
        %1231 = vmatpush1.bf16.msra.mxu0 0
        %1232 = vmatprep.subr.bf16.mxu0 0
        %1233 = vmatpush1.bf16.msra.mxu0 0
        %1234 = vmatprep.subr.bf16.mxu0 0
        %1235 = vmatpush1.bf16.msra.mxu0 0
        %1236 = vmatprep.subr.bf16.mxu0 0
        %1237 = vmatpush1.bf16.msra.mxu0 0
        %1238 = vmatprep.subr.bf16.mxu0 0
        %1239 = vmatpush1.bf16.msra.mxu0 0
        %1240 = vmatprep.subr.bf16.mxu0 0
        %1241 = vmatpush1.bf16.msra.mxu0 0
        %1242 = vmatprep.subr.bf16.mxu0 0
        %1243 = vmatpush1.bf16.msra.mxu0 0
        %1244 = vmatprep.mubr.bf16.mxu0 0
        %1245 = vmatmul.mubr.bf16.gmra.mrb[0].mxu0 %v1210
        %v1246 = vpop.f32.mrb[0].mxu0
        %v1247 = vadd.f32 %v1183, %v1246
        %v1248 = vpop.f32.mrb[0].mxu0
        %v1249 = vpop.f32.mrb[0].mxu0
        %v1250 = vpop.f32.mrb[0].mxu0
        %1251 = vdwg.mxu0
        %v1252 = vadd.f32 %v1247, %v1076
        %v1253 = vsel %vm341, %v1252, 0.0
        %1254 = vadd.xlane.f32.xlu0 %v1253
        %v1255 = vpop.xlane.xlu0 %1254
        %v1256 = vmul.f32 %v1255, %v1056
        %v1257 = vsub.f32 %v1252, %v1256
        %v1258 = vmul.f32 %v1257, %v1257
        %v1259 = vsel %vm341, %v1258, 0.0
        %1260 = vadd.xlane.f32.xlu0 %v1259
        %v1261 = vpop.xlane.xlu0 %1260
        %v1262 = vmul.f32 %v1261, %v1056
        %v1263 = vadd.f32 %v1262, 1e-12
        %v1264 = vrsqrt.pop %v1263
        %v1265 = vmul.f32 %v1257, %v1264
        %v1266 = vlaneseq
        %v1267 = vshrl.u32 %v1266, 7
        %v1268 = vsub.s32 6, %v1267
        %v1269 = vrot.slane %v319, %v1268
        %v1270 = vmul.f32 %v1265, %v1269
        %v1271 = vlaneseq
        %v1272 = vshrl.u32 %v1271, 7
        %v1273 = vsub.s32 7, %v1272
        %v1274 = vrot.slane %v319, %v1273
        %v1275 = vadd.f32 %v1270, %v1274
        %1276 = vst.msk [vmem:[%s308] sm:$0xff] %vm341, %v1275
        %s1277 = sand.u32 %s188, 1
        %s1278 = scalar_lea.sflag [#allocation4], %s1277
        %s1279 = sand.u32 %s188, 1
        %s1280 = smul.addr %s1279, 8
        %s1281 = scalar_lea.vmem [#allocation7], %s1280
        // Predicated region
        $region57: #{tpu_custom_call.1} parent=47 // pred_check
          %p1282 = pneg %p198
        $region58: #{tpu_custom_call.1} parent=47 // pred_check_branch
          %1284 = sbr.rel (%p1282) target = $region60
        $region59: #{tpu_custom_call.1} parent=47 // pred_region
          %s1286 = ssub.s32 128, 128
          %1287 = vsyncadd %s1278, %s1286
          %s1288 = smul.addr %s23, 128
          %s1289 = scalar_lea.hbm %s7, %s1288
          %s1291 = sshll.u32 %s1281, 4
          %s1292 = int_to_ptr.vmem [resolvable:$true] %s1291
          %1294 = dma.vmem_to_hbm [thread:$0]  %s1292, 128, %s1289, %s1278
        $region60: #{tpu_custom_call.1} parent=47 // pred_fallthru
          _
      $region48: #{tpu_custom_call.1} parent=5 // pred_fallthru
        _
      %p1295 = scmp.le.s32.totalorder 2, %s18
      // Predicated region
      $region61: #{tpu_custom_call.1} parent=5 // pred_check
        %p1296 = pneg %p1295
      $region62: #{tpu_custom_call.1} parent=5 // pred_check_branch
        %1298 = sbr.rel (%p1296) target = $region64
      $region63: #{tpu_custom_call.1} parent=5 // pred_region
        %s1299 = ssub.s32 %s18, 2
        // Predicated region
        $region65: #{tpu_custom_call.1} parent=63 // pred_check
          %p1300 = pneg %p204
        $region66: #{tpu_custom_call.1} parent=63 // pred_check_branch
          %1302 = sbr.rel (%p1300) target = $region68
        $region67: #{tpu_custom_call.1} parent=63 // pred_region
          %s1303 = sand.u32 %s189, 1
          %s1304 = scalar_lea.sflag [#allocation4], %s1303
          %s1305 = sand.u32 %s189, 1
          %s1306 = smul.addr %s1305, 8
          %s1307 = scalar_lea.vmem [#allocation7], %s1306
          %1308 = dma.done %s1304, 128
        $region68: #{tpu_custom_call.1} parent=63 // pred_fallthru
          _
      $region64: #{tpu_custom_call.1} parent=5 // pred_fallthru
        _
    $region6: #{tpu_custom_call.1} parent=1 // loop_footer
      %s22 = sadd.s32 1, %s18
    $region7: #{tpu_custom_call.1} parent=1 // loop_footer_branch
      %17 = sbr.rel target = $region3
    $region8: #{tpu_custom_call.1} parent=1 // loop_exit
      _
    %1309 = vsyncpa [#allocation3], 1
    %s1310 = scalar_lea.sflag [#allocation3], 1
    %1311 = vsyncpa %s1310, 1
    %1312 = vsyncpa [#allocation6], 1
    %1313 = vsyncpa [#allocation4], 1
    %s1314 = scalar_lea.sflag [#allocation4], 1
    %1315 = vsyncpa %s1314, 1

</llo_original>
